<compile_context>
chip_gen: v7x
topology: tpu7x:2x2x1
jax: 0.10.0
libtpu: 0.0.40
codegen_flags: <defaults>
</compile_context>

<pallas_src>
import numpy as np
import jax
import jax.numpy as jnp
from jax.experimental import pallas as pl
from jax.experimental.pallas import tpu as pltpu

EPS = 1e-5
PADW = 128            # lane-aligned data start inside the padded-x scratch


def _rup8(n):
    return -(-n // 8) * 8


def _build_param_slab(params, interp_M, B):
    """Pack every parameter tensor into one f32 slab (a single input DMA).

    Each block starts on a sublane-aligned (multiple-of-8) row and is
    zero-padded to PW lanes.  Returns (slab, row_offsets, dims)."""
    C = params['qa_w'].shape[0]          # n_features
    K15 = params['qa_w'].shape[1]
    D = params['qs_w1'].shape[1]         # d_model
    F = params['fb_w'].shape[0]          # n_filters
    KF = params['fb_w'].shape[1]
    WIN = params['nd_w'].shape[0]
    Lc, L = interp_M.shape
    D1 = D + D + F
    D2 = 1 + 3 + F

    col = lambda a: jnp.asarray(a, jnp.float32).reshape(-1, 1)

    qa_blk = jnp.concatenate(
        [params['qa_w'], col(params['qa_b']), col(params['qa_g']),
         col(params['qa_beta'])], axis=1)                           # (C, K15+3)
    w1cat = jnp.concatenate([params['qs_w1'], params['sn_w1'],
                             params['fs_w1']], axis=1)              # (C, D1)
    w1t_blk = jnp.tile(w1cat, (B, 1))                               # (B*C, D1)
    pb_blk = jnp.repeat(jnp.eye(B, dtype=jnp.float32), C, axis=1)   # (B, B*C)
    b1 = jnp.concatenate([params['qs_b1'], params['sn_b1'], params['fs_b1']])
    b2 = jnp.concatenate([params['qs_b2'], params['sn_b2'], params['fs_b2']])
    b12_blk = jnp.stack([b1, jnp.pad(b2, (0, D1 - D2))], axis=0)    # (2, D1)
    w2_blk = jnp.zeros((D1, D2), jnp.float32)                       # block-diag
    w2_blk = w2_blk.at[0:D, 0:1].set(params['qs_w2'])
    w2_blk = w2_blk.at[D:2 * D, 1:4].set(params['sn_w2'])
    w2_blk = w2_blk.at[2 * D:2 * D + F, 4:4 + F].set(params['fs_w2'])
    ndw_blk = jnp.asarray(params['nd_w'], jnp.float32)              # (WIN, C)
    ndv_blk = jnp.stack([params['nd_b'], params['nd_g'], params['nd_beta'],
                         params['nd_pw_w'][:, 0],
                         jnp.pad(params['nd_pw_b'], (0, C - 1))], axis=0)  # (5,C)
    fb_blk = jnp.asarray(params['fb_w'], jnp.float32)               # (F, KF)
    pm_blk = jnp.repeat(jnp.eye(B, dtype=jnp.float32), Lc, axis=1)  # (B, B*Lc)
    a_blk = jnp.tile(jnp.asarray(interp_M, jnp.float32), (B, 1))    # (B*Lc, L)

    blocks = [('qa', qa_blk), ('w1t', w1t_blk), ('pb', pb_blk),
              ('b12', b12_blk), ('w2', w2_blk), ('ndw', ndw_blk),
              ('ndv', ndv_blk), ('fb', fb_blk), ('pm', pm_blk), ('A', a_blk)]
    PW = max(128, max(int(a.shape[1]) for _, a in blocks))
    padded, offsets, r0 = [], {}, 0
    for name, arr in blocks:
        arr = jnp.asarray(arr, jnp.float32)
        offsets[name] = r0
        r, c = arr.shape
        padded.append(jnp.pad(arr, ((0, _rup8(r) - r), (0, PW - c))))
        r0 += _rup8(r)
    slab = jnp.concatenate(padded, axis=0)
    dims = dict(C=C, K15=K15, D=D, F=F, KF=KF, WIN=WIN, Lc=Lc, L=L, D1=D1, D2=D2)
    return slab, offsets, dims


def adaptive_preprocessor(x, params, interp_M):
    """Returns (output, quality_score, noise_mask, strategy_weights)."""
    B, L = x.shape
    slab, off, dm = _build_param_slab(params, interp_M, B)
    C, K15, F, KF = dm['C'], dm['K15'], dm['F'], dm['KF']
    D, D1, D2, WIN, Lc = dm['D'], dm['D1'], dm['D2'], dm['WIN'], dm['Lc']
    STR = WIN // 2
    PAD15 = (K15 - 1) // 2          # 7
    PADF = (KF - 1) // 2            # 15

    assert C == D == F, "fused-head packing needs d_model == n_features == n_filters"
    assert dm['L'] == L and interp_M.shape[1] == L and L >= WIN
    assert Lc == (L - WIN) // STR + 1

    QOFF = PADW - PAD15             # read offset for the k=15 conv
    FOFF = PADW - PADF              # read offset for the 31-tap filter conv
    XW = 2 * PADW + L               # padded-x scratch width (aligned data start)

    def kernel(x_ref, p_ref, om_ref, qsw_ref, xpad_ref):
        x = x_ref[...]                                           # (B, L)

        # Padded copy of x: zero ONLY the halo strips, store x lane-aligned.
        xpad_ref[:, PADW - PADF:PADW] = jnp.zeros((B, PADF), jnp.float32)
        xpad_ref[:, PADW + L:PADW + L + PADF] = jnp.zeros((B, PADF), jnp.float32)
        xpad_ref[:, PADW:PADW + L] = x

        # ---------------- SignalQualityAssessor ---------------------------
        qa = p_ref[off['qa']:off['qa'] + C, 0:K15 + 3]
        taps = qa[:, 0:K15]
        qa_b = qa[:, K15:K15 + 1]
        qa_g = qa[:, K15 + 1:K15 + 2]
        qa_be = qa[:, K15 + 2:K15 + 3]
        accs = []                                   # Conv1d(1->C, k=15, pad=7)
        for b in range(B):
            a = jnp.zeros((C, L), jnp.float32)
            for k in range(K15):
                a = a + taps[:, k:k + 1] * xpad_ref[b:b + 1, QOFF + k:QOFF + k + L]
            accs.append(a + qa_b)
        # BatchNorm1d (training/batch stats), two-pass centered variance.
        n_qa = float(B * L)
        s1 = accs[0].sum(axis=1, keepdims=True)
        for b in range(1, B):
            s1 = s1 + accs[b].sum(axis=1, keepdims=True)
        mean_c = s1 * (1.0 / n_qa)                               # (C, 1)
        s2 = jnp.zeros((C, 1), jnp.float32)
        for b in range(B):
            d = accs[b] - mean_c
            s2 = s2 + (d * d).sum(axis=1, keepdims=True)
        scale_c = jax.lax.rsqrt(s2 * (1.0 / n_qa) + EPS) * qa_g
        hm = []                                     # ReLU + AdaptiveAvgPool1d(1)
        for b in range(B):
            h = jnp.maximum((accs[b] - mean_c) * scale_c + qa_be, 0.0)
            hm.append(h.sum(axis=1, keepdims=True) * (1.0 / L))
        hmean = jnp.concatenate(hm, axis=0)                      # (B*C, 1), b-major

        # Fused first layers (quality_scorer | strategy_net | filter_selector):
        # z1 = Pb @ (hmean * tile(w1cat, B))  -- reshape-free MXU reduction.
        w1t = p_ref[off['w1t']:off['w1t'] + B * C, 0:D1]
        pb_m = p_ref[off['pb']:off['pb'] + B, 0:B * C]
        b1 = p_ref[off['b12']:off['b12'] + 1, 0:D1]
        b2 = p_ref[off['b12'] + 1:off['b12'] + 2, 0:D2]
        w2 = p_ref[off['w2']:off['w2'] + D1, 0:D2]
        z1 = jnp.dot(pb_m, hmean * w1t, preferred_element_type=jnp.float32) + b1
        h1 = jnp.maximum(z1, 0.0)
        z2 = jnp.dot(h1, w2, preferred_element_type=jnp.float32) + b2   # (B, D2)
        q = jax.nn.sigmoid(z2[:, 0:1])
        sw = jax.nn.sigmoid(z2[:, 1:4])
        logits = z2[:, 4:4 + F]
        logits = logits - jnp.max(logits, axis=-1, keepdims=True)
        ex = jnp.exp(logits)
        wsel = ex / jnp.sum(ex, axis=-1, keepdims=True)           # (B, F)
        qsw_ref[...] = jnp.concatenate([q, sw], axis=1)           # (B, 4)

        # ---------------- NoiseDetector -----------------------------------
        ndw = p_ref[off['ndw']:off['ndw'] + WIN, 0:C]
        ndb = p_ref[off['ndv']:off['ndv'] + 1, 0:C]
        ndg = p_ref[off['ndv'] + 1:off['ndv'] + 2, 0:C]
        ndbe = p_ref[off['ndv'] + 2:off['ndv'] + 3, 0:C]
        pw = p_ref[off['ndv'] + 3:off['ndv'] + 4, 0:C]
        pwb = p_ref[off['ndv'] + 4:off['ndv'] + 5, 0:1]
        # TODO(synk): for large L replace this unrolled gather with two strided
        # reshapes (even/odd half-overlapping windows, STR == WIN//2).
        wins = jnp.concatenate(
            [x_ref[b:b + 1, j * STR:j * STR + WIN]
             for b in range(B) for j in range(Lc)], axis=0)       # (B*Lc, WIN)
        nf = jnp.dot(wins, ndw, preferred_element_type=jnp.float32) + ndb
        n_nd = float(B * Lc)
        mu = jnp.sum(nf, axis=0, keepdims=True) * (1.0 / n_nd)
        dv = nf - mu
        var = jnp.sum(dv * dv, axis=0, keepdims=True) * (1.0 / n_nd)
        hn = jnp.maximum(dv * (jax.lax.rsqrt(var + EPS) * ndg) + ndbe, 0.0)
        mvals = jax.nn.sigmoid(jnp.sum(hn * pw, axis=1, keepdims=True) + pwb)
        # F.interpolate(mode='linear') as one MXU matmul: mask = Pm @ (mvals * A)
        pm_m = p_ref[off['pm']:off['pm'] + B, 0:B * Lc]
        a_m = p_ref[off['A']:off['A'] + B * Lc, 0:L]
        mask = jnp.dot(pm_m, mvals * a_m, preferred_element_type=jnp.float32)

        # ---------------- AdaptiveFilterBank -------------------------------
        # sum_f wsel[b,f] * conv(x, filter_f)  ==  conv(x, wsel @ filters)
        fbw = p_ref[off['fb']:off['fb'] + F, 0:KF]
        eff = jnp.dot(wsel, fbw, preferred_element_type=jnp.float32)   # (B, KF)
        filtered = jnp.zeros((B, L), jnp.float32)
        # TODO(synk): fold L onto sublanes -- with B=2 these (B, L) stages only
        # use 2/8 sublanes of every vreg.
        for k in range(KF):
            filtered = filtered + eff[:, k:k + 1] * xpad_ref[:, FOFF + k:FOFF + k + L]

        out = (sw[:, 0:1] * x + sw[:, 1:2] * filtered
               + sw[:, 2:3] * (x * (1.0 - mask)))
        om_ref[0:B, :] = out
        om_ref[B:2 * B, :] = mask

    # TODO(synk): for large L, tile over an L grid (parallel axis for v7x's two
    # TensorCores) with a separate BN-stats phase, exploit the 2-nonzeros-per-
    # column structure of the interpolation matrix instead of the dense A block,
    # and set vmem_limit_bytes explicitly.
    om, qsw = pl.pallas_call(
        kernel,
        out_shape=(jax.ShapeDtypeStruct((2 * B, L), jnp.float32),   # [out ; mask]
                   jax.ShapeDtypeStruct((B, 4), jnp.float32)),      # [q | sw]
        in_specs=[pl.BlockSpec(memory_space=pltpu.MemorySpace.VMEM),
                  pl.BlockSpec(memory_space=pltpu.MemorySpace.VMEM)],
        out_specs=(pl.BlockSpec(memory_space=pltpu.MemorySpace.VMEM),
                   pl.BlockSpec(memory_space=pltpu.MemorySpace.VMEM)),
        scratch_shapes=[pltpu.VMEM((B, XW), jnp.float32)],
    )(x, slab)
    return om[0:B], qsw[:, 0:1], om[B:2 * B], qsw[:, 1:4]


def linear_interp_matrix(in_size, out_size):
    """PyTorch F.interpolate(mode='linear', align_corners=False) as a matrix."""
    scale = in_size / out_size
    t = (np.arange(out_size) + 0.5) * scale - 0.5
    t = np.clip(t, 0.0, in_size - 1)
    i0 = np.floor(t).astype(np.int64)
    i1 = np.minimum(i0 + 1, in_size - 1)
    w = t - i0
    M = np.zeros((in_size, out_size), np.float32)
    cols = np.arange(out_size)
    M[i0, cols] += (1.0 - w)
    M[i1, cols] += w
    return M


def init_params(key, n_features=8, d_model=8, n_filters=8, flen=31, win=64):
    ks = jax.random.split(key, 19)
    def rn(k, shape, scale=0.2):
        return (scale * jax.random.normal(k, shape)).astype(jnp.float32)
    p = {}
    # SignalQualityAssessor
    p['qa_w'] = rn(ks[0], (n_features, 15))
    p['qa_b'] = rn(ks[1], (n_features,))
    p['qa_g'] = jnp.ones((n_features,), jnp.float32)
    p['qa_beta'] = jnp.zeros((n_features,), jnp.float32)
    p['qs_w1'] = rn(ks[2], (n_features, d_model))
    p['qs_b1'] = rn(ks[3], (d_model,))
    p['qs_w2'] = rn(ks[4], (d_model, 1))
    p['qs_b2'] = rn(ks[5], (1,))
    # strategy_net
    p['sn_w1'] = rn(ks[6], (d_model, d_model))
    p['sn_b1'] = rn(ks[7], (d_model,))
    p['sn_w2'] = rn(ks[8], (d_model, 3))
    p['sn_b2'] = rn(ks[9], (3,))
    # NoiseDetector
    p['nd_w'] = rn(ks[10], (win, d_model))
    p['nd_b'] = rn(ks[11], (d_model,))
    p['nd_g'] = jnp.ones((d_model,), jnp.float32)
    p['nd_beta'] = jnp.zeros((d_model,), jnp.float32)
    p['nd_pw_w'] = rn(ks[12], (d_model, 1))
    p['nd_pw_b'] = rn(ks[13], (1,))
    # AdaptiveFilterBank
    p['fb_w'] = rn(ks[14], (n_filters, flen), scale=1.0)
    p['fs_w1'] = rn(ks[15], (n_filters, n_filters))
    p['fs_b1'] = rn(ks[16], (n_filters,))
    p['fs_w2'] = rn(ks[17], (n_filters, n_filters))
    p['fs_b2'] = rn(ks[18], (n_filters,))
    return p


def reference_forward(x, p, interp_M):
    """Independent pure-JAX reference mirroring the PyTorch forward."""
    B, L = x.shape
    xp7 = jnp.pad(x, ((0, 0), (7, 7)))
    idx = jnp.arange(L)[:, None] + jnp.arange(15)[None, :]
    conv = jnp.einsum('blk,ck->bcl', xp7[:, idx], p['qa_w']) + p['qa_b'][None, :, None]
    mu = conv.mean(axis=(0, 2), keepdims=True)
    var = ((conv - mu) ** 2).mean(axis=(0, 2), keepdims=True)
    h = jnp.maximum((conv - mu) / jnp.sqrt(var + EPS)
                    * p['qa_g'][None, :, None] + p['qa_beta'][None, :, None], 0.0)
    features = h.mean(axis=2)
    q = jax.nn.sigmoid(jnp.maximum(features @ p['qs_w1'] + p['qs_b1'], 0.0)
                       @ p['qs_w2'] + p['qs_b2'])
    sw = jax.nn.sigmoid(jnp.maximum(features @ p['sn_w1'] + p['sn_b1'], 0.0)
                        @ p['sn_w2'] + p['sn_b2'])
    Lc = interp_M.shape[0]
    jidx = jnp.arange(Lc)[:, None] * 32 + jnp.arange(64)[None, :]
    nf = jnp.einsum('bjk,kc->bcj', x[:, jidx], p['nd_w']) + p['nd_b'][None, :, None]
    mu2 = nf.mean(axis=(0, 2), keepdims=True)
    var2 = ((nf - mu2) ** 2).mean(axis=(0, 2), keepdims=True)
    h2 = jnp.maximum((nf - mu2) / jnp.sqrt(var2 + EPS)
                     * p['nd_g'][None, :, None] + p['nd_beta'][None, :, None], 0.0)
    m = jax.nn.sigmoid(jnp.einsum('bcj,c->bj', h2, p['nd_pw_w'][:, 0]) + p['nd_pw_b'][0])
    mask = m @ interp_M
    wsel = jax.nn.softmax(jnp.maximum(features @ p['fs_w1'] + p['fs_b1'], 0.0)
                          @ p['fs_w2'] + p['fs_b2'], axis=-1)
    xp15 = jnp.pad(x, ((0, 0), (15, 15)))
    idx2 = jnp.arange(L)[:, None] + jnp.arange(31)[None, :]
    filt = jnp.einsum('blk,fk->bfl', xp15[:, idx2], p['fb_w'])
    filtered = jnp.einsum('bfl,bf->bl', filt, wsel)
    out = sw[:, 0:1] * x + sw[:, 1:2] * filtered + sw[:, 2:3] * (x * (1.0 - mask))
    return out, q, mask, sw


if __name__ == "__main__":
    B, L = 2, 128                   # L >= window_size (64) required by NoiseDetector
    key = jax.random.PRNGKey(0)
    kx, kp = jax.random.split(key)
    x = jax.random.normal(kx, (B, L), jnp.float32)
    params = init_params(kp)
    Lc = (L - 64) // 32 + 1
    interp_M = jnp.asarray(linear_interp_matrix(Lc, L))

    results = adaptive_preprocessor(x, params, interp_M)
    results = jax.block_until_ready(results)

    refs = reference_forward(x, params, interp_M)
    for got, want in zip(results, refs):
        np.testing.assert_allclose(np.asarray(got), np.asarray(want),
                                   rtol=1e-2, atol=1e-2)
    print("KERNEL_OK")
</pallas_src>

<mosaic_0001>
module attributes {stable_mosaic.version = 11 : i64} {
  func.func @kernel(%arg0: memref<2x128xf32, #tpu.memory_space<vmem>>, %arg1: memref<160x128xf32, #tpu.memory_space<vmem>>, %arg2: memref<4x128xf32, #tpu.memory_space<vmem>>, %arg3: memref<2x4xf32, #tpu.memory_space<vmem>>, %arg4: memref<2x384xf32, #tpu.memory_space<vmem>>) attributes {dimension_semantics = [], scalar_prefetch = 0 : i64, scratch_operands = 1 : i64, tpu.core_type = #tpu.core_type<tc>} {
    %c0 = arith.constant 0 : index
    %c0_0 = arith.constant 0 : index
    %0 = vector.load %arg0[%c0, %c0_0] : memref<2x128xf32, #tpu.memory_space<vmem>>, vector<2x128xf32>
    %cst = arith.constant 0.000000e+00 : f32
    %1 = vector.broadcast %cst : f32 to vector<2x15xf32>
    %c0_1 = arith.constant 0 : index
    %c113 = arith.constant 113 : index
    %2 = vector.load %arg4[%c0_1, %c113] : memref<2x384xf32, #tpu.memory_space<vmem>>, vector<2x15xf32>
    tpu.vector_store %arg4[%c0_1, %c113], %1 {strides = array<i32>} : memref<2x384xf32, #tpu.memory_space<vmem>>, vector<2x15xf32>,
    %cst_2 = arith.constant 0.000000e+00 : f32
    %3 = vector.broadcast %cst_2 : f32 to vector<2x15xf32>
    %c0_3 = arith.constant 0 : index
    %c256 = arith.constant 256 : index
    %4 = vector.load %arg4[%c0_3, %c256] : memref<2x384xf32, #tpu.memory_space<vmem>>, vector<2x15xf32>
    tpu.vector_store %arg4[%c0_3, %c256], %3 {strides = array<i32>} : memref<2x384xf32, #tpu.memory_space<vmem>>, vector<2x15xf32>,
    %c0_4 = arith.constant 0 : index
    %c128 = arith.constant 128 : index
    %5 = vector.load %arg4[%c0_4, %c128] : memref<2x384xf32, #tpu.memory_space<vmem>>, vector<2x128xf32>
    tpu.vector_store %arg4[%c0_4, %c128], %0 {strides = array<i32>} : memref<2x384xf32, #tpu.memory_space<vmem>>, vector<2x128xf32>,
    %c0_5 = arith.constant 0 : index
    %c0_6 = arith.constant 0 : index
    %6 = vector.load %arg1[%c0_5, %c0_6] : memref<160x128xf32, #tpu.memory_space<vmem>>, vector<8x18xf32>
    %7 = vector.extract_strided_slice %6 {offsets = [0, 0], sizes = [8, 15], strides = [1, 1]} : vector<8x18xf32> to vector<8x15xf32>
    %8 = vector.extract_strided_slice %6 {offsets = [0, 15], sizes = [8, 1], strides = [1, 1]} : vector<8x18xf32> to vector<8x1xf32>
    %9 = vector.extract_strided_slice %6 {offsets = [0, 16], sizes = [8, 1], strides = [1, 1]} : vector<8x18xf32> to vector<8x1xf32>
    %10 = vector.extract_strided_slice %6 {offsets = [0, 17], sizes = [8, 1], strides = [1, 1]} : vector<8x18xf32> to vector<8x1xf32>
    %cst_7 = arith.constant 0.000000e+00 : f32
    %11 = vector.broadcast %cst_7 : f32 to vector<8x128xf32>
    %12 = vector.extract_strided_slice %7 {offsets = [0, 0], sizes = [8, 1], strides = [1, 1]} : vector<8x15xf32> to vector<8x1xf32>
    %c0_8 = arith.constant 0 : index
    %c121 = arith.constant 121 : index
    %13 = vector.load %arg4[%c0_8, %c121] : memref<2x384xf32, #tpu.memory_space<vmem>>, vector<1x128xf32>
    %14 = vector.broadcast %12 : vector<8x1xf32> to vector<8x128xf32>
    %15 = vector.broadcast %13 : vector<1x128xf32> to vector<8x128xf32>
    %16 = arith.mulf %14, %15 : vector<8x128xf32>
    %17 = arith.addf %11, %16 : vector<8x128xf32>
    %18 = vector.extract_strided_slice %7 {offsets = [0, 1], sizes = [8, 1], strides = [1, 1]} : vector<8x15xf32> to vector<8x1xf32>
    %c0_9 = arith.constant 0 : index
    %c122 = arith.constant 122 : index
    %19 = vector.load %arg4[%c0_9, %c122] : memref<2x384xf32, #tpu.memory_space<vmem>>, vector<1x128xf32>
    %20 = vector.broadcast %18 : vector<8x1xf32> to vector<8x128xf32>
    %21 = vector.broadcast %19 : vector<1x128xf32> to vector<8x128xf32>
    %22 = arith.mulf %20, %21 : vector<8x128xf32>
    %23 = arith.addf %17, %22 : vector<8x128xf32>
    %24 = vector.extract_strided_slice %7 {offsets = [0, 2], sizes = [8, 1], strides = [1, 1]} : vector<8x15xf32> to vector<8x1xf32>
    %c0_10 = arith.constant 0 : index
    %c123 = arith.constant 123 : index
    %25 = vector.load %arg4[%c0_10, %c123] : memref<2x384xf32, #tpu.memory_space<vmem>>, vector<1x128xf32>
    %26 = vector.broadcast %24 : vector<8x1xf32> to vector<8x128xf32>
    %27 = vector.broadcast %25 : vector<1x128xf32> to vector<8x128xf32>
    %28 = arith.mulf %26, %27 : vector<8x128xf32>
    %29 = arith.addf %23, %28 : vector<8x128xf32>
    %30 = vector.extract_strided_slice %7 {offsets = [0, 3], sizes = [8, 1], strides = [1, 1]} : vector<8x15xf32> to vector<8x1xf32>
    %c0_11 = arith.constant 0 : index
    %c124 = arith.constant 124 : index
    %31 = vector.load %arg4[%c0_11, %c124] : memref<2x384xf32, #tpu.memory_space<vmem>>, vector<1x128xf32>
    %32 = vector.broadcast %30 : vector<8x1xf32> to vector<8x128xf32>
    %33 = vector.broadcast %31 : vector<1x128xf32> to vector<8x128xf32>
    %34 = arith.mulf %32, %33 : vector<8x128xf32>
    %35 = arith.addf %29, %34 : vector<8x128xf32>
    %36 = vector.extract_strided_slice %7 {offsets = [0, 4], sizes = [8, 1], strides = [1, 1]} : vector<8x15xf32> to vector<8x1xf32>
    %c0_12 = arith.constant 0 : index
    %c125 = arith.constant 125 : index
    %37 = vector.load %arg4[%c0_12, %c125] : memref<2x384xf32, #tpu.memory_space<vmem>>, vector<1x128xf32>
    %38 = vector.broadcast %36 : vector<8x1xf32> to vector<8x128xf32>
    %39 = vector.broadcast %37 : vector<1x128xf32> to vector<8x128xf32>
    %40 = arith.mulf %38, %39 : vector<8x128xf32>
    %41 = arith.addf %35, %40 : vector<8x128xf32>
    %42 = vector.extract_strided_slice %7 {offsets = [0, 5], sizes = [8, 1], strides = [1, 1]} : vector<8x15xf32> to vector<8x1xf32>
    %c0_13 = arith.constant 0 : index
    %c126 = arith.constant 126 : index
    %43 = vector.load %arg4[%c0_13, %c126] : memref<2x384xf32, #tpu.memory_space<vmem>>, vector<1x128xf32>
    %44 = vector.broadcast %42 : vector<8x1xf32> to vector<8x128xf32>
    %45 = vector.broadcast %43 : vector<1x128xf32> to vector<8x128xf32>
    %46 = arith.mulf %44, %45 : vector<8x128xf32>
    %47 = arith.addf %41, %46 : vector<8x128xf32>
    %48 = vector.extract_strided_slice %7 {offsets = [0, 6], sizes = [8, 1], strides = [1, 1]} : vector<8x15xf32> to vector<8x1xf32>
    %c0_14 = arith.constant 0 : index
    %c127 = arith.constant 127 : index
    %49 = vector.load %arg4[%c0_14, %c127] : memref<2x384xf32, #tpu.memory_space<vmem>>, vector<1x128xf32>
    %50 = vector.broadcast %48 : vector<8x1xf32> to vector<8x128xf32>
    %51 = vector.broadcast %49 : vector<1x128xf32> to vector<8x128xf32>
    %52 = arith.mulf %50, %51 : vector<8x128xf32>
    %53 = arith.addf %47, %52 : vector<8x128xf32>
    %54 = vector.extract_strided_slice %7 {offsets = [0, 7], sizes = [8, 1], strides = [1, 1]} : vector<8x15xf32> to vector<8x1xf32>
    %c0_15 = arith.constant 0 : index
    %c128_16 = arith.constant 128 : index
    %55 = vector.load %arg4[%c0_15, %c128_16] : memref<2x384xf32, #tpu.memory_space<vmem>>, vector<1x128xf32>
    %56 = vector.broadcast %54 : vector<8x1xf32> to vector<8x128xf32>
    %57 = vector.broadcast %55 : vector<1x128xf32> to vector<8x128xf32>
    %58 = arith.mulf %56, %57 : vector<8x128xf32>
    %59 = arith.addf %53, %58 : vector<8x128xf32>
    %60 = vector.extract_strided_slice %7 {offsets = [0, 8], sizes = [8, 1], strides = [1, 1]} : vector<8x15xf32> to vector<8x1xf32>
    %c0_17 = arith.constant 0 : index
    %c129 = arith.constant 129 : index
    %61 = vector.load %arg4[%c0_17, %c129] : memref<2x384xf32, #tpu.memory_space<vmem>>, vector<1x128xf32>
    %62 = vector.broadcast %60 : vector<8x1xf32> to vector<8x128xf32>
    %63 = vector.broadcast %61 : vector<1x128xf32> to vector<8x128xf32>
    %64 = arith.mulf %62, %63 : vector<8x128xf32>
    %65 = arith.addf %59, %64 : vector<8x128xf32>
    %66 = vector.extract_strided_slice %7 {offsets = [0, 9], sizes = [8, 1], strides = [1, 1]} : vector<8x15xf32> to vector<8x1xf32>
    %c0_18 = arith.constant 0 : index
    %c130 = arith.constant 130 : index
    %67 = vector.load %arg4[%c0_18, %c130] : memref<2x384xf32, #tpu.memory_space<vmem>>, vector<1x128xf32>
    %68 = vector.broadcast %66 : vector<8x1xf32> to vector<8x128xf32>
    %69 = vector.broadcast %67 : vector<1x128xf32> to vector<8x128xf32>
    %70 = arith.mulf %68, %69 : vector<8x128xf32>
    %71 = arith.addf %65, %70 : vector<8x128xf32>
    %72 = vector.extract_strided_slice %7 {offsets = [0, 10], sizes = [8, 1], strides = [1, 1]} : vector<8x15xf32> to vector<8x1xf32>
    %c0_19 = arith.constant 0 : index
    %c131 = arith.constant 131 : index
    %73 = vector.load %arg4[%c0_19, %c131] : memref<2x384xf32, #tpu.memory_space<vmem>>, vector<1x128xf32>
    %74 = vector.broadcast %72 : vector<8x1xf32> to vector<8x128xf32>
    %75 = vector.broadcast %73 : vector<1x128xf32> to vector<8x128xf32>
    %76 = arith.mulf %74, %75 : vector<8x128xf32>
    %77 = arith.addf %71, %76 : vector<8x128xf32>
    %78 = vector.extract_strided_slice %7 {offsets = [0, 11], sizes = [8, 1], strides = [1, 1]} : vector<8x15xf32> to vector<8x1xf32>
    %c0_20 = arith.constant 0 : index
    %c132 = arith.constant 132 : index
    %79 = vector.load %arg4[%c0_20, %c132] : memref<2x384xf32, #tpu.memory_space<vmem>>, vector<1x128xf32>
    %80 = vector.broadcast %78 : vector<8x1xf32> to vector<8x128xf32>
    %81 = vector.broadcast %79 : vector<1x128xf32> to vector<8x128xf32>
    %82 = arith.mulf %80, %81 : vector<8x128xf32>
    %83 = arith.addf %77, %82 : vector<8x128xf32>
    %84 = vector.extract_strided_slice %7 {offsets = [0, 12], sizes = [8, 1], strides = [1, 1]} : vector<8x15xf32> to vector<8x1xf32>
    %c0_21 = arith.constant 0 : index
    %c133 = arith.constant 133 : index
    %85 = vector.load %arg4[%c0_21, %c133] : memref<2x384xf32, #tpu.memory_space<vmem>>, vector<1x128xf32>
    %86 = vector.broadcast %84 : vector<8x1xf32> to vector<8x128xf32>
    %87 = vector.broadcast %85 : vector<1x128xf32> to vector<8x128xf32>
    %88 = arith.mulf %86, %87 : vector<8x128xf32>
    %89 = arith.addf %83, %88 : vector<8x128xf32>
    %90 = vector.extract_strided_slice %7 {offsets = [0, 13], sizes = [8, 1], strides = [1, 1]} : vector<8x15xf32> to vector<8x1xf32>
    %c0_22 = arith.constant 0 : index
    %c134 = arith.constant 134 : index
    %91 = vector.load %arg4[%c0_22, %c134] : memref<2x384xf32, #tpu.memory_space<vmem>>, vector<1x128xf32>
    %92 = vector.broadcast %90 : vector<8x1xf32> to vector<8x128xf32>
    %93 = vector.broadcast %91 : vector<1x128xf32> to vector<8x128xf32>
    %94 = arith.mulf %92, %93 : vector<8x128xf32>
    %95 = arith.addf %89, %94 : vector<8x128xf32>
    %96 = vector.extract_strided_slice %7 {offsets = [0, 14], sizes = [8, 1], strides = [1, 1]} : vector<8x15xf32> to vector<8x1xf32>
    %c0_23 = arith.constant 0 : index
    %c135 = arith.constant 135 : index
    %97 = vector.load %arg4[%c0_23, %c135] : memref<2x384xf32, #tpu.memory_space<vmem>>, vector<1x128xf32>
    %98 = vector.broadcast %96 : vector<8x1xf32> to vector<8x128xf32>
    %99 = vector.broadcast %97 : vector<1x128xf32> to vector<8x128xf32>
    %100 = arith.mulf %98, %99 : vector<8x128xf32>
    %101 = arith.addf %95, %100 : vector<8x128xf32>
    %102 = vector.broadcast %8 : vector<8x1xf32> to vector<8x128xf32>
    %103 = arith.addf %101, %102 : vector<8x128xf32>
    %cst_24 = arith.constant 0.000000e+00 : f32
    %104 = vector.broadcast %cst_24 : f32 to vector<8x128xf32>
    %105 = vector.extract_strided_slice %7 {offsets = [0, 0], sizes = [8, 1], strides = [1, 1]} : vector<8x15xf32> to vector<8x1xf32>
    %c1 = arith.constant 1 : index
    %c121_25 = arith.constant 121 : index
    %106 = vector.load %arg4[%c1, %c121_25] : memref<2x384xf32, #tpu.memory_space<vmem>>, vector<1x128xf32>
    %107 = vector.broadcast %105 : vector<8x1xf32> to vector<8x128xf32>
    %108 = vector.broadcast %106 : vector<1x128xf32> to vector<8x128xf32>
    %109 = arith.mulf %107, %108 : vector<8x128xf32>
    %110 = arith.addf %104, %109 : vector<8x128xf32>
    %111 = vector.extract_strided_slice %7 {offsets = [0, 1], sizes = [8, 1], strides = [1, 1]} : vector<8x15xf32> to vector<8x1xf32>
    %c1_26 = arith.constant 1 : index
    %c122_27 = arith.constant 122 : index
    %112 = vector.load %arg4[%c1_26, %c122_27] : memref<2x384xf32, #tpu.memory_space<vmem>>, vector<1x128xf32>
    %113 = vector.broadcast %111 : vector<8x1xf32> to vector<8x128xf32>
    %114 = vector.broadcast %112 : vector<1x128xf32> to vector<8x128xf32>
    %115 = arith.mulf %113, %114 : vector<8x128xf32>
    %116 = arith.addf %110, %115 : vector<8x128xf32>
    %117 = vector.extract_strided_slice %7 {offsets = [0, 2], sizes = [8, 1], strides = [1, 1]} : vector<8x15xf32> to vector<8x1xf32>
    %c1_28 = arith.constant 1 : index
    %c123_29 = arith.constant 123 : index
    %118 = vector.load %arg4[%c1_28, %c123_29] : memref<2x384xf32, #tpu.memory_space<vmem>>, vector<1x128xf32>
    %119 = vector.broadcast %117 : vector<8x1xf32> to vector<8x128xf32>
    %120 = vector.broadcast %118 : vector<1x128xf32> to vector<8x128xf32>
    %121 = arith.mulf %119, %120 : vector<8x128xf32>
    %122 = arith.addf %116, %121 : vector<8x128xf32>
    %123 = vector.extract_strided_slice %7 {offsets = [0, 3], sizes = [8, 1], strides = [1, 1]} : vector<8x15xf32> to vector<8x1xf32>
    %c1_30 = arith.constant 1 : index
    %c124_31 = arith.constant 124 : index
    %124 = vector.load %arg4[%c1_30, %c124_31] : memref<2x384xf32, #tpu.memory_space<vmem>>, vector<1x128xf32>
    %125 = vector.broadcast %123 : vector<8x1xf32> to vector<8x128xf32>
    %126 = vector.broadcast %124 : vector<1x128xf32> to vector<8x128xf32>
    %127 = arith.mulf %125, %126 : vector<8x128xf32>
    %128 = arith.addf %122, %127 : vector<8x128xf32>
    %129 = vector.extract_strided_slice %7 {offsets = [0, 4], sizes = [8, 1], strides = [1, 1]} : vector<8x15xf32> to vector<8x1xf32>
    %c1_32 = arith.constant 1 : index
    %c125_33 = arith.constant 125 : index
    %130 = vector.load %arg4[%c1_32, %c125_33] : memref<2x384xf32, #tpu.memory_space<vmem>>, vector<1x128xf32>
    %131 = vector.broadcast %129 : vector<8x1xf32> to vector<8x128xf32>
    %132 = vector.broadcast %130 : vector<1x128xf32> to vector<8x128xf32>
    %133 = arith.mulf %131, %132 : vector<8x128xf32>
    %134 = arith.addf %128, %133 : vector<8x128xf32>
    %135 = vector.extract_strided_slice %7 {offsets = [0, 5], sizes = [8, 1], strides = [1, 1]} : vector<8x15xf32> to vector<8x1xf32>
    %c1_34 = arith.constant 1 : index
    %c126_35 = arith.constant 126 : index
    %136 = vector.load %arg4[%c1_34, %c126_35] : memref<2x384xf32, #tpu.memory_space<vmem>>, vector<1x128xf32>
    %137 = vector.broadcast %135 : vector<8x1xf32> to vector<8x128xf32>
    %138 = vector.broadcast %136 : vector<1x128xf32> to vector<8x128xf32>
    %139 = arith.mulf %137, %138 : vector<8x128xf32>
    %140 = arith.addf %134, %139 : vector<8x128xf32>
    %141 = vector.extract_strided_slice %7 {offsets = [0, 6], sizes = [8, 1], strides = [1, 1]} : vector<8x15xf32> to vector<8x1xf32>
    %c1_36 = arith.constant 1 : index
    %c127_37 = arith.constant 127 : index
    %142 = vector.load %arg4[%c1_36, %c127_37] : memref<2x384xf32, #tpu.memory_space<vmem>>, vector<1x128xf32>
    %143 = vector.broadcast %141 : vector<8x1xf32> to vector<8x128xf32>
    %144 = vector.broadcast %142 : vector<1x128xf32> to vector<8x128xf32>
    %145 = arith.mulf %143, %144 : vector<8x128xf32>
    %146 = arith.addf %140, %145 : vector<8x128xf32>
    %147 = vector.extract_strided_slice %7 {offsets = [0, 7], sizes = [8, 1], strides = [1, 1]} : vector<8x15xf32> to vector<8x1xf32>
    %c1_38 = arith.constant 1 : index
    %c128_39 = arith.constant 128 : index
    %148 = vector.load %arg4[%c1_38, %c128_39] : memref<2x384xf32, #tpu.memory_space<vmem>>, vector<1x128xf32>
    %149 = vector.broadcast %147 : vector<8x1xf32> to vector<8x128xf32>
    %150 = vector.broadcast %148 : vector<1x128xf32> to vector<8x128xf32>
    %151 = arith.mulf %149, %150 : vector<8x128xf32>
    %152 = arith.addf %146, %151 : vector<8x128xf32>
    %153 = vector.extract_strided_slice %7 {offsets = [0, 8], sizes = [8, 1], strides = [1, 1]} : vector<8x15xf32> to vector<8x1xf32>
    %c1_40 = arith.constant 1 : index
    %c129_41 = arith.constant 129 : index
    %154 = vector.load %arg4[%c1_40, %c129_41] : memref<2x384xf32, #tpu.memory_space<vmem>>, vector<1x128xf32>
    %155 = vector.broadcast %153 : vector<8x1xf32> to vector<8x128xf32>
    %156 = vector.broadcast %154 : vector<1x128xf32> to vector<8x128xf32>
    %157 = arith.mulf %155, %156 : vector<8x128xf32>
    %158 = arith.addf %152, %157 : vector<8x128xf32>
    %159 = vector.extract_strided_slice %7 {offsets = [0, 9], sizes = [8, 1], strides = [1, 1]} : vector<8x15xf32> to vector<8x1xf32>
    %c1_42 = arith.constant 1 : index
    %c130_43 = arith.constant 130 : index
    %160 = vector.load %arg4[%c1_42, %c130_43] : memref<2x384xf32, #tpu.memory_space<vmem>>, vector<1x128xf32>
    %161 = vector.broadcast %159 : vector<8x1xf32> to vector<8x128xf32>
    %162 = vector.broadcast %160 : vector<1x128xf32> to vector<8x128xf32>
    %163 = arith.mulf %161, %162 : vector<8x128xf32>
    %164 = arith.addf %158, %163 : vector<8x128xf32>
    %165 = vector.extract_strided_slice %7 {offsets = [0, 10], sizes = [8, 1], strides = [1, 1]} : vector<8x15xf32> to vector<8x1xf32>
    %c1_44 = arith.constant 1 : index
    %c131_45 = arith.constant 131 : index
    %166 = vector.load %arg4[%c1_44, %c131_45] : memref<2x384xf32, #tpu.memory_space<vmem>>, vector<1x128xf32>
    %167 = vector.broadcast %165 : vector<8x1xf32> to vector<8x128xf32>
    %168 = vector.broadcast %166 : vector<1x128xf32> to vector<8x128xf32>
    %169 = arith.mulf %167, %168 : vector<8x128xf32>
    %170 = arith.addf %164, %169 : vector<8x128xf32>
    %171 = vector.extract_strided_slice %7 {offsets = [0, 11], sizes = [8, 1], strides = [1, 1]} : vector<8x15xf32> to vector<8x1xf32>
    %c1_46 = arith.constant 1 : index
    %c132_47 = arith.constant 132 : index
    %172 = vector.load %arg4[%c1_46, %c132_47] : memref<2x384xf32, #tpu.memory_space<vmem>>, vector<1x128xf32>
    %173 = vector.broadcast %171 : vector<8x1xf32> to vector<8x128xf32>
    %174 = vector.broadcast %172 : vector<1x128xf32> to vector<8x128xf32>
    %175 = arith.mulf %173, %174 : vector<8x128xf32>
    %176 = arith.addf %170, %175 : vector<8x128xf32>
    %177 = vector.extract_strided_slice %7 {offsets = [0, 12], sizes = [8, 1], strides = [1, 1]} : vector<8x15xf32> to vector<8x1xf32>
    %c1_48 = arith.constant 1 : index
    %c133_49 = arith.constant 133 : index
    %178 = vector.load %arg4[%c1_48, %c133_49] : memref<2x384xf32, #tpu.memory_space<vmem>>, vector<1x128xf32>
    %179 = vector.broadcast %177 : vector<8x1xf32> to vector<8x128xf32>
    %180 = vector.broadcast %178 : vector<1x128xf32> to vector<8x128xf32>
    %181 = arith.mulf %179, %180 : vector<8x128xf32>
    %182 = arith.addf %176, %181 : vector<8x128xf32>
    %183 = vector.extract_strided_slice %7 {offsets = [0, 13], sizes = [8, 1], strides = [1, 1]} : vector<8x15xf32> to vector<8x1xf32>
    %c1_50 = arith.constant 1 : index
    %c134_51 = arith.constant 134 : index
    %184 = vector.load %arg4[%c1_50, %c134_51] : memref<2x384xf32, #tpu.memory_space<vmem>>, vector<1x128xf32>
    %185 = vector.broadcast %183 : vector<8x1xf32> to vector<8x128xf32>
    %186 = vector.broadcast %184 : vector<1x128xf32> to vector<8x128xf32>
    %187 = arith.mulf %185, %186 : vector<8x128xf32>
    %188 = arith.addf %182, %187 : vector<8x128xf32>
    %189 = vector.extract_strided_slice %7 {offsets = [0, 14], sizes = [8, 1], strides = [1, 1]} : vector<8x15xf32> to vector<8x1xf32>
    %c1_52 = arith.constant 1 : index
    %c135_53 = arith.constant 135 : index
    %190 = vector.load %arg4[%c1_52, %c135_53] : memref<2x384xf32, #tpu.memory_space<vmem>>, vector<1x128xf32>
    %191 = vector.broadcast %189 : vector<8x1xf32> to vector<8x128xf32>
    %192 = vector.broadcast %190 : vector<1x128xf32> to vector<8x128xf32>
    %193 = arith.mulf %191, %192 : vector<8x128xf32>
    %194 = arith.addf %188, %193 : vector<8x128xf32>
    %195 = vector.broadcast %8 : vector<8x1xf32> to vector<8x128xf32>
    %196 = arith.addf %194, %195 : vector<8x128xf32>
    %cst_54 = arith.constant dense<0.000000e+00> : vector<8xf32>
    %197 = vector.multi_reduction <add>, %103, %cst_54 [1] : vector<8x128xf32> to vector<8xf32>
    %198 = vector.shape_cast %197 : vector<8xf32> to vector<8x1xf32>
    %cst_55 = arith.constant dense<0.000000e+00> : vector<8xf32>
    %199 = vector.multi_reduction <add>, %196, %cst_55 [1] : vector<8x128xf32> to vector<8xf32>
    %200 = vector.shape_cast %199 : vector<8xf32> to vector<8x1xf32>
    %201 = arith.addf %198, %200 : vector<8x1xf32>
    %cst_56 = arith.constant 3.906250e-03 : f32
    %202 = vector.broadcast %cst_56 : f32 to vector<8x1xf32>
    %203 = arith.mulf %201, %202 : vector<8x1xf32>
    %cst_57 = arith.constant 0.000000e+00 : f32
    %204 = vector.broadcast %cst_57 : f32 to vector<8x1xf32>
    %205 = vector.broadcast %203 : vector<8x1xf32> to vector<8x128xf32>
    %206 = arith.subf %103, %205 : vector<8x128xf32>
    %207 = arith.mulf %206, %206 : vector<8x128xf32>
    %cst_58 = arith.constant dense<0.000000e+00> : vector<8xf32>
    %208 = vector.multi_reduction <add>, %207, %cst_58 [1] : vector<8x128xf32> to vector<8xf32>
    %209 = vector.shape_cast %208 : vector<8xf32> to vector<8x1xf32>
    %210 = arith.addf %204, %209 : vector<8x1xf32>
    %211 = vector.broadcast %203 : vector<8x1xf32> to vector<8x128xf32>
    %212 = arith.subf %196, %211 : vector<8x128xf32>
    %213 = arith.mulf %212, %212 : vector<8x128xf32>
    %cst_59 = arith.constant dense<0.000000e+00> : vector<8xf32>
    %214 = vector.multi_reduction <add>, %213, %cst_59 [1] : vector<8x128xf32> to vector<8xf32>
    %215 = vector.shape_cast %214 : vector<8xf32> to vector<8x1xf32>
    %216 = arith.addf %210, %215 : vector<8x1xf32>
    %cst_60 = arith.constant 3.906250e-03 : f32
    %217 = vector.broadcast %cst_60 : f32 to vector<8x1xf32>
    %218 = arith.mulf %216, %217 : vector<8x1xf32>
    %cst_61 = arith.constant 9.99999974E-6 : f32
    %219 = vector.broadcast %cst_61 : f32 to vector<8x1xf32>
    %220 = arith.addf %218, %219 : vector<8x1xf32>
    %221 = math.rsqrt %220 : vector<8x1xf32>
    %222 = arith.mulf %221, %9 : vector<8x1xf32>
    %223 = vector.broadcast %203 : vector<8x1xf32> to vector<8x128xf32>
    %224 = arith.subf %103, %223 : vector<8x128xf32>
    %225 = vector.broadcast %222 : vector<8x1xf32> to vector<8x128xf32>
    %226 = arith.mulf %224, %225 : vector<8x128xf32>
    %227 = vector.broadcast %10 : vector<8x1xf32> to vector<8x128xf32>
    %228 = arith.addf %226, %227 : vector<8x128xf32>
    %cst_62 = arith.constant 0.000000e+00 : f32
    %229 = vector.broadcast %cst_62 : f32 to vector<8x128xf32>
    %230 = arith.maximumf %228, %229 : vector<8x128xf32>
    %cst_63 = arith.constant dense<0.000000e+00> : vector<8xf32>
    %231 = vector.multi_reduction <add>, %230, %cst_63 [1] : vector<8x128xf32> to vector<8xf32>
    %232 = vector.shape_cast %231 : vector<8xf32> to vector<8x1xf32>
    %cst_64 = arith.constant 7.812500e-03 : f32
    %233 = vector.broadcast %cst_64 : f32 to vector<8x1xf32>
    %234 = arith.mulf %232, %233 : vector<8x1xf32>
    %235 = vector.broadcast %203 : vector<8x1xf32> to vector<8x128xf32>
    %236 = arith.subf %196, %235 : vector<8x128xf32>
    %237 = vector.broadcast %222 : vector<8x1xf32> to vector<8x128xf32>
    %238 = arith.mulf %236, %237 : vector<8x128xf32>
    %239 = vector.broadcast %10 : vector<8x1xf32> to vector<8x128xf32>
    %240 = arith.addf %238, %239 : vector<8x128xf32>
    %cst_65 = arith.constant 0.000000e+00 : f32
    %241 = vector.broadcast %cst_65 : f32 to vector<8x128xf32>
    %242 = arith.maximumf %240, %241 : vector<8x128xf32>
    %cst_66 = arith.constant dense<0.000000e+00> : vector<8xf32>
    %243 = vector.multi_reduction <add>, %242, %cst_66 [1] : vector<8x128xf32> to vector<8xf32>
    %244 = vector.shape_cast %243 : vector<8xf32> to vector<8x1xf32>
    %cst_67 = arith.constant 7.812500e-03 : f32
    %245 = vector.broadcast %cst_67 : f32 to vector<8x1xf32>
    %246 = arith.mulf %244, %245 : vector<8x1xf32>
    %247 = tpu.concatenate %234, %246 in 0 : vector<8x1xf32>, vector<8x1xf32> -> vector<16x1xf32>
    %c8 = arith.constant 8 : index
    %c0_68 = arith.constant 0 : index
    %248 = vector.load %arg1[%c8, %c0_68] : memref<160x128xf32, #tpu.memory_space<vmem>>, vector<16x24xf32>
    %c24 = arith.constant 24 : index
    %c0_69 = arith.constant 0 : index
    %249 = vector.load %arg1[%c24, %c0_69] : memref<160x128xf32, #tpu.memory_space<vmem>>, vector<2x16xf32>
    %c32 = arith.constant 32 : index
    %c0_70 = arith.constant 0 : index
    %250 = vector.load %arg1[%c32, %c0_70] : memref<160x128xf32, #tpu.memory_space<vmem>>, vector<1x24xf32>
    %c33 = arith.constant 33 : index
    %c0_71 = arith.constant 0 : index
    %251 = vector.load %arg1[%c33, %c0_71] : memref<160x128xf32, #tpu.memory_space<vmem>>, vector<1x12xf32>
    %c40 = arith.constant 40 : index
    %c0_72 = arith.constant 0 : index
    %252 = vector.load %arg1[%c40, %c0_72] : memref<160x128xf32, #tpu.memory_space<vmem>>, vector<24x12xf32>
    %253 = vector.broadcast %247 : vector<16x1xf32> to vector<16x24xf32>
    %254 = arith.mulf %253, %248 : vector<16x24xf32>
    %cst_73 = arith.constant dense<0.000000e+00> : vector<2x24xf32>
    %255 = tpu.matmul %249, %254, %cst_73 {dimension_numbers = #tpu.dot_dimension_numbers<[1], [0], [0], [1], [0, 0, 1, 1], [], []>} : vector<2x16xf32>, vector<16x24xf32>, vector<2x24xf32> -> vector<2x24xf32>
    %256 = vector.broadcast %250 : vector<1x24xf32> to vector<2x24xf32>
    %257 = arith.addf %255, %256 : vector<2x24xf32>
    %cst_74 = arith.constant 0.000000e+00 : f32
    %258 = vector.broadcast %cst_74 : f32 to vector<2x24xf32>
    %259 = arith.maximumf %257, %258 : vector<2x24xf32>
    %cst_75 = arith.constant dense<0.000000e+00> : vector<2x12xf32>
    %260 = tpu.matmul %259, %252, %cst_75 {dimension_numbers = #tpu.dot_dimension_numbers<[1], [0], [0], [1], [0, 0, 1, 1], [], []>} : vector<2x24xf32>, vector<24x12xf32>, vector<2x12xf32> -> vector<2x12xf32>
    %261 = vector.broadcast %251 : vector<1x12xf32> to vector<2x12xf32>
    %262 = arith.addf %260, %261 : vector<2x12xf32>
    %263 = vector.extract_strided_slice %262 {offsets = [0, 0], sizes = [2, 1], strides = [1, 1]} : vector<2x12xf32> to vector<2x1xf32>
    %264 = arith.negf %263 : vector<2x1xf32>
    %265 = math.exp %264 : vector<2x1xf32>
    %cst_76 = arith.constant 1.000000e+00 : f32
    %266 = vector.broadcast %cst_76 : f32 to vector<2x1xf32>
    %267 = arith.addf %266, %265 : vector<2x1xf32>
    %268 = arith.divf %266, %267 : vector<2x1xf32>
    %269 = vector.extract_strided_slice %262 {offsets = [0, 1], sizes = [2, 3], strides = [1, 1]} : vector<2x12xf32> to vector<2x3xf32>
    %270 = arith.negf %269 : vector<2x3xf32>
    %271 = math.exp %270 : vector<2x3xf32>
    %cst_77 = arith.constant 1.000000e+00 : f32
    %272 = vector.broadcast %cst_77 : f32 to vector<2x3xf32>
    %273 = arith.addf %272, %271 : vector<2x3xf32>
    %274 = arith.divf %272, %273 : vector<2x3xf32>
    %275 = vector.extract_strided_slice %262 {offsets = [0, 4], sizes = [2, 8], strides = [1, 1]} : vector<2x12xf32> to vector<2x8xf32>
    %cst_78 = arith.constant dense<0xFF800000> : vector<2xf32>
    %276 = vector.multi_reduction <maximumf>, %275, %cst_78 [1] : vector<2x8xf32> to vector<2xf32>
    %277 = vector.shape_cast %276 : vector<2xf32> to vector<2x1xf32>
    %278 = vector.broadcast %277 : vector<2x1xf32> to vector<2x8xf32>
    %279 = arith.subf %275, %278 : vector<2x8xf32>
    %280 = math.exp %279 : vector<2x8xf32>
    %cst_79 = arith.constant dense<0.000000e+00> : vector<2xf32>
    %281 = vector.multi_reduction <add>, %280, %cst_79 [1] : vector<2x8xf32> to vector<2xf32>
    %282 = vector.shape_cast %281 : vector<2xf32> to vector<2x1xf32>
    %283 = vector.broadcast %282 : vector<2x1xf32> to vector<2x8xf32>
    %284 = arith.divf %280, %283 : vector<2x8xf32>
    %285 = tpu.concatenate %268, %274 in 1 : vector<2x1xf32>, vector<2x3xf32> -> vector<2x4xf32>
    %c0_80 = arith.constant 0 : index
    %c0_81 = arith.constant 0 : index
    %286 = vector.load %arg3[%c0_80, %c0_81] : memref<2x4xf32, #tpu.memory_space<vmem>>, vector<2x4xf32>
    tpu.vector_store %arg3[%c0_80, %c0_81], %285 {strides = array<i32>} : memref<2x4xf32, #tpu.memory_space<vmem>>, vector<2x4xf32>,
    %c64 = arith.constant 64 : index
    %c0_82 = arith.constant 0 : index
    %287 = vector.load %arg1[%c64, %c0_82] : memref<160x128xf32, #tpu.memory_space<vmem>>, vector<64x8xf32>
    %c128_83 = arith.constant 128 : index
    %c0_84 = arith.constant 0 : index
    %288 = vector.load %arg1[%c128_83, %c0_84] : memref<160x128xf32, #tpu.memory_space<vmem>>, vector<1x8xf32>
    %c129_85 = arith.constant 129 : index
    %c0_86 = arith.constant 0 : index
    %289 = vector.load %arg1[%c129_85, %c0_86] : memref<160x128xf32, #tpu.memory_space<vmem>>, vector<1x8xf32>
    %c130_87 = arith.constant 130 : index
    %c0_88 = arith.constant 0 : index
    %290 = vector.load %arg1[%c130_87, %c0_88] : memref<160x128xf32, #tpu.memory_space<vmem>>, vector<1x8xf32>
    %c131_89 = arith.constant 131 : index
    %c0_90 = arith.constant 0 : index
    %291 = vector.load %arg1[%c131_89, %c0_90] : memref<160x128xf32, #tpu.memory_space<vmem>>, vector<1x8xf32>
    %c132_91 = arith.constant 132 : index
    %c0_92 = arith.constant 0 : index
    %292 = vector.load %arg1[%c132_91, %c0_92] : memref<160x128xf32, #tpu.memory_space<vmem>>, vector<1x1xf32>
    %c0_93 = arith.constant 0 : index
    %c0_94 = arith.constant 0 : index
    %293 = vector.load %arg0[%c0_93, %c0_94] : memref<2x128xf32, #tpu.memory_space<vmem>>, vector<1x64xf32>
    %c0_95 = arith.constant 0 : index
    %c32_96 = arith.constant 32 : index
    %294 = vector.load %arg0[%c0_95, %c32_96] : memref<2x128xf32, #tpu.memory_space<vmem>>, vector<1x64xf32>
    %c0_97 = arith.constant 0 : index
    %c64_98 = arith.constant 64 : index
    %295 = vector.load %arg0[%c0_97, %c64_98] : memref<2x128xf32, #tpu.memory_space<vmem>>, vector<1x64xf32>
    %c1_99 = arith.constant 1 : index
    %c0_100 = arith.constant 0 : index
    %296 = vector.load %arg0[%c1_99, %c0_100] : memref<2x128xf32, #tpu.memory_space<vmem>>, vector<1x64xf32>
    %c1_101 = arith.constant 1 : index
    %c32_102 = arith.constant 32 : index
    %297 = vector.load %arg0[%c1_101, %c32_102] : memref<2x128xf32, #tpu.memory_space<vmem>>, vector<1x64xf32>
    %c1_103 = arith.constant 1 : index
    %c64_104 = arith.constant 64 : index
    %298 = vector.load %arg0[%c1_103, %c64_104] : memref<2x128xf32, #tpu.memory_space<vmem>>, vector<1x64xf32>
    %299 = tpu.concatenate %293, %294, %295, %296, %297, %298 in 0 : vector<1x64xf32>, vector<1x64xf32>, vector<1x64xf32>, vector<1x64xf32>, vector<1x64xf32>, vector<1x64xf32> -> vector<6x64xf32>
    %cst_105 = arith.constant dense<0.000000e+00> : vector<6x8xf32>
    %300 = tpu.matmul %299, %287, %cst_105 {dimension_numbers = #tpu.dot_dimension_numbers<[1], [0], [0], [1], [0, 0, 1, 1], [], []>} : vector<6x64xf32>, vector<64x8xf32>, vector<6x8xf32> -> vector<6x8xf32>
    %301 = vector.broadcast %288 : vector<1x8xf32> to vector<6x8xf32>
    %302 = arith.addf %300, %301 : vector<6x8xf32>
    %cst_106 = arith.constant dense<0.000000e+00> : vector<8xf32>
    %303 = vector.multi_reduction <add>, %302, %cst_106 [0] : vector<6x8xf32> to vector<8xf32>
    %304 = vector.shape_cast %303 : vector<8xf32> to vector<1x8xf32>
    %cst_107 = arith.constant 0.166666672 : f32
    %305 = vector.broadcast %cst_107 : f32 to vector<1x8xf32>
    %306 = arith.mulf %304, %305 : vector<1x8xf32>
    %307 = vector.broadcast %306 : vector<1x8xf32> to vector<6x8xf32>
    %308 = arith.subf %302, %307 : vector<6x8xf32>
    %309 = arith.mulf %308, %308 : vector<6x8xf32>
    %cst_108 = arith.constant dense<0.000000e+00> : vector<8xf32>
    %310 = vector.multi_reduction <add>, %309, %cst_108 [0] : vector<6x8xf32> to vector<8xf32>
    %311 = vector.shape_cast %310 : vector<8xf32> to vector<1x8xf32>
    %cst_109 = arith.constant 0.166666672 : f32
    %312 = vector.broadcast %cst_109 : f32 to vector<1x8xf32>
    %313 = arith.mulf %311, %312 : vector<1x8xf32>
    %cst_110 = arith.constant 9.99999974E-6 : f32
    %314 = vector.broadcast %cst_110 : f32 to vector<1x8xf32>
    %315 = arith.addf %313, %314 : vector<1x8xf32>
    %316 = math.rsqrt %315 : vector<1x8xf32>
    %317 = arith.mulf %316, %289 : vector<1x8xf32>
    %318 = vector.broadcast %317 : vector<1x8xf32> to vector<6x8xf32>
    %319 = arith.mulf %308, %318 : vector<6x8xf32>
    %320 = vector.broadcast %290 : vector<1x8xf32> to vector<6x8xf32>
    %321 = arith.addf %319, %320 : vector<6x8xf32>
    %cst_111 = arith.constant 0.000000e+00 : f32
    %322 = vector.broadcast %cst_111 : f32 to vector<6x8xf32>
    %323 = arith.maximumf %321, %322 : vector<6x8xf32>
    %324 = vector.broadcast %291 : vector<1x8xf32> to vector<6x8xf32>
    %325 = arith.mulf %323, %324 : vector<6x8xf32>
    %cst_112 = arith.constant dense<0.000000e+00> : vector<6xf32>
    %326 = vector.multi_reduction <add>, %325, %cst_112 [1] : vector<6x8xf32> to vector<6xf32>
    %327 = vector.shape_cast %326 : vector<6xf32> to vector<6x1xf32>
    %328 = vector.broadcast %292 : vector<1x1xf32> to vector<6x1xf32>
    %329 = arith.addf %327, %328 : vector<6x1xf32>
    %330 = arith.negf %329 : vector<6x1xf32>
    %331 = math.exp %330 : vector<6x1xf32>
    %cst_113 = arith.constant 1.000000e+00 : f32
    %332 = vector.broadcast %cst_113 : f32 to vector<6x1xf32>
    %333 = arith.addf %332, %331 : vector<6x1xf32>
    %334 = arith.divf %332, %333 : vector<6x1xf32>
    %c144 = arith.constant 144 : index
    %c0_114 = arith.constant 0 : index
    %335 = vector.load %arg1[%c144, %c0_114] : memref<160x128xf32, #tpu.memory_space<vmem>>, vector<2x6xf32>
    %c152 = arith.constant 152 : index
    %c0_115 = arith.constant 0 : index
    %336 = vector.load %arg1[%c152, %c0_115] : memref<160x128xf32, #tpu.memory_space<vmem>>, vector<6x128xf32>
    %337 = vector.broadcast %334 : vector<6x1xf32> to vector<6x128xf32>
    %338 = arith.mulf %337, %336 : vector<6x128xf32>
    %cst_116 = arith.constant dense<0.000000e+00> : vector<2x128xf32>
    %339 = tpu.matmul %335, %338, %cst_116 {dimension_numbers = #tpu.dot_dimension_numbers<[1], [0], [0], [1], [0, 0, 1, 1], [], []>} : vector<2x6xf32>, vector<6x128xf32>, vector<2x128xf32> -> vector<2x128xf32>
    %c136 = arith.constant 136 : index
    %c0_117 = arith.constant 0 : index
    %340 = vector.load %arg1[%c136, %c0_117] : memref<160x128xf32, #tpu.memory_space<vmem>>, vector<8x31xf32>
    %cst_118 = arith.constant dense<0.000000e+00> : vector<2x31xf32>
    %341 = tpu.matmul %284, %340, %cst_118 {dimension_numbers = #tpu.dot_dimension_numbers<[1], [0], [0], [1], [0, 0, 1, 1], [], []>} : vector<2x8xf32>, vector<8x31xf32>, vector<2x31xf32> -> vector<2x31xf32>
    %cst_119 = arith.constant 0.000000e+00 : f32
    %342 = vector.broadcast %cst_119 : f32 to vector<2x128xf32>
    %343 = vector.extract_strided_slice %341 {offsets = [0, 0], sizes = [2, 1], strides = [1, 1]} : vector<2x31xf32> to vector<2x1xf32>
    %c0_120 = arith.constant 0 : index
    %c113_121 = arith.constant 113 : index
    %344 = vector.load %arg4[%c0_120, %c113_121] : memref<2x384xf32, #tpu.memory_space<vmem>>, vector<2x128xf32>
    %345 = vector.broadcast %343 : vector<2x1xf32> to vector<2x128xf32>
    %346 = arith.mulf %345, %344 : vector<2x128xf32>
    %347 = arith.addf %342, %346 : vector<2x128xf32>
    %348 = vector.extract_strided_slice %341 {offsets = [0, 1], sizes = [2, 1], strides = [1, 1]} : vector<2x31xf32> to vector<2x1xf32>
    %c0_122 = arith.constant 0 : index
    %c114 = arith.constant 114 : index
    %349 = vector.load %arg4[%c0_122, %c114] : memref<2x384xf32, #tpu.memory_space<vmem>>, vector<2x128xf32>
    %350 = vector.broadcast %348 : vector<2x1xf32> to vector<2x128xf32>
    %351 = arith.mulf %350, %349 : vector<2x128xf32>
    %352 = arith.addf %347, %351 : vector<2x128xf32>
    %353 = vector.extract_strided_slice %341 {offsets = [0, 2], sizes = [2, 1], strides = [1, 1]} : vector<2x31xf32> to vector<2x1xf32>
    %c0_123 = arith.constant 0 : index
    %c115 = arith.constant 115 : index
    %354 = vector.load %arg4[%c0_123, %c115] : memref<2x384xf32, #tpu.memory_space<vmem>>, vector<2x128xf32>
    %355 = vector.broadcast %353 : vector<2x1xf32> to vector<2x128xf32>
    %356 = arith.mulf %355, %354 : vector<2x128xf32>
    %357 = arith.addf %352, %356 : vector<2x128xf32>
    %358 = vector.extract_strided_slice %341 {offsets = [0, 3], sizes = [2, 1], strides = [1, 1]} : vector<2x31xf32> to vector<2x1xf32>
    %c0_124 = arith.constant 0 : index
    %c116 = arith.constant 116 : index
    %359 = vector.load %arg4[%c0_124, %c116] : memref<2x384xf32, #tpu.memory_space<vmem>>, vector<2x128xf32>
    %360 = vector.broadcast %358 : vector<2x1xf32> to vector<2x128xf32>
    %361 = arith.mulf %360, %359 : vector<2x128xf32>
    %362 = arith.addf %357, %361 : vector<2x128xf32>
    %363 = vector.extract_strided_slice %341 {offsets = [0, 4], sizes = [2, 1], strides = [1, 1]} : vector<2x31xf32> to vector<2x1xf32>
    %c0_125 = arith.constant 0 : index
    %c117 = arith.constant 117 : index
    %364 = vector.load %arg4[%c0_125, %c117] : memref<2x384xf32, #tpu.memory_space<vmem>>, vector<2x128xf32>
    %365 = vector.broadcast %363 : vector<2x1xf32> to vector<2x128xf32>
    %366 = arith.mulf %365, %364 : vector<2x128xf32>
    %367 = arith.addf %362, %366 : vector<2x128xf32>
    %368 = vector.extract_strided_slice %341 {offsets = [0, 5], sizes = [2, 1], strides = [1, 1]} : vector<2x31xf32> to vector<2x1xf32>
    %c0_126 = arith.constant 0 : index
    %c118 = arith.constant 118 : index
    %369 = vector.load %arg4[%c0_126, %c118] : memref<2x384xf32, #tpu.memory_space<vmem>>, vector<2x128xf32>
    %370 = vector.broadcast %368 : vector<2x1xf32> to vector<2x128xf32>
    %371 = arith.mulf %370, %369 : vector<2x128xf32>
    %372 = arith.addf %367, %371 : vector<2x128xf32>
    %373 = vector.extract_strided_slice %341 {offsets = [0, 6], sizes = [2, 1], strides = [1, 1]} : vector<2x31xf32> to vector<2x1xf32>
    %c0_127 = arith.constant 0 : index
    %c119 = arith.constant 119 : index
    %374 = vector.load %arg4[%c0_127, %c119] : memref<2x384xf32, #tpu.memory_space<vmem>>, vector<2x128xf32>
    %375 = vector.broadcast %373 : vector<2x1xf32> to vector<2x128xf32>
    %376 = arith.mulf %375, %374 : vector<2x128xf32>
    %377 = arith.addf %372, %376 : vector<2x128xf32>
    %378 = vector.extract_strided_slice %341 {offsets = [0, 7], sizes = [2, 1], strides = [1, 1]} : vector<2x31xf32> to vector<2x1xf32>
    %c0_128 = arith.constant 0 : index
    %c120 = arith.constant 120 : index
    %379 = vector.load %arg4[%c0_128, %c120] : memref<2x384xf32, #tpu.memory_space<vmem>>, vector<2x128xf32>
    %380 = vector.broadcast %378 : vector<2x1xf32> to vector<2x128xf32>
    %381 = arith.mulf %380, %379 : vector<2x128xf32>
    %382 = arith.addf %377, %381 : vector<2x128xf32>
    %383 = vector.extract_strided_slice %341 {offsets = [0, 8], sizes = [2, 1], strides = [1, 1]} : vector<2x31xf32> to vector<2x1xf32>
    %c0_129 = arith.constant 0 : index
    %c121_130 = arith.constant 121 : index
    %384 = vector.load %arg4[%c0_129, %c121_130] : memref<2x384xf32, #tpu.memory_space<vmem>>, vector<2x128xf32>
    %385 = vector.broadcast %383 : vector<2x1xf32> to vector<2x128xf32>
    %386 = arith.mulf %385, %384 : vector<2x128xf32>
    %387 = arith.addf %382, %386 : vector<2x128xf32>
    %388 = vector.extract_strided_slice %341 {offsets = [0, 9], sizes = [2, 1], strides = [1, 1]} : vector<2x31xf32> to vector<2x1xf32>
    %c0_131 = arith.constant 0 : index
    %c122_132 = arith.constant 122 : index
    %389 = vector.load %arg4[%c0_131, %c122_132] : memref<2x384xf32, #tpu.memory_space<vmem>>, vector<2x128xf32>
    %390 = vector.broadcast %388 : vector<2x1xf32> to vector<2x128xf32>
    %391 = arith.mulf %390, %389 : vector<2x128xf32>
    %392 = arith.addf %387, %391 : vector<2x128xf32>
    %393 = vector.extract_strided_slice %341 {offsets = [0, 10], sizes = [2, 1], strides = [1, 1]} : vector<2x31xf32> to vector<2x1xf32>
    %c0_133 = arith.constant 0 : index
    %c123_134 = arith.constant 123 : index
    %394 = vector.load %arg4[%c0_133, %c123_134] : memref<2x384xf32, #tpu.memory_space<vmem>>, vector<2x128xf32>
    %395 = vector.broadcast %393 : vector<2x1xf32> to vector<2x128xf32>
    %396 = arith.mulf %395, %394 : vector<2x128xf32>
    %397 = arith.addf %392, %396 : vector<2x128xf32>
    %398 = vector.extract_strided_slice %341 {offsets = [0, 11], sizes = [2, 1], strides = [1, 1]} : vector<2x31xf32> to vector<2x1xf32>
    %c0_135 = arith.constant 0 : index
    %c124_136 = arith.constant 124 : index
    %399 = vector.load %arg4[%c0_135, %c124_136] : memref<2x384xf32, #tpu.memory_space<vmem>>, vector<2x128xf32>
    %400 = vector.broadcast %398 : vector<2x1xf32> to vector<2x128xf32>
    %401 = arith.mulf %400, %399 : vector<2x128xf32>
    %402 = arith.addf %397, %401 : vector<2x128xf32>
    %403 = vector.extract_strided_slice %341 {offsets = [0, 12], sizes = [2, 1], strides = [1, 1]} : vector<2x31xf32> to vector<2x1xf32>
    %c0_137 = arith.constant 0 : index
    %c125_138 = arith.constant 125 : index
    %404 = vector.load %arg4[%c0_137, %c125_138] : memref<2x384xf32, #tpu.memory_space<vmem>>, vector<2x128xf32>
    %405 = vector.broadcast %403 : vector<2x1xf32> to vector<2x128xf32>
    %406 = arith.mulf %405, %404 : vector<2x128xf32>
    %407 = arith.addf %402, %406 : vector<2x128xf32>
    %408 = vector.extract_strided_slice %341 {offsets = [0, 13], sizes = [2, 1], strides = [1, 1]} : vector<2x31xf32> to vector<2x1xf32>
    %c0_139 = arith.constant 0 : index
    %c126_140 = arith.constant 126 : index
    %409 = vector.load %arg4[%c0_139, %c126_140] : memref<2x384xf32, #tpu.memory_space<vmem>>, vector<2x128xf32>
    %410 = vector.broadcast %408 : vector<2x1xf32> to vector<2x128xf32>
    %411 = arith.mulf %410, %409 : vector<2x128xf32>
    %412 = arith.addf %407, %411 : vector<2x128xf32>
    %413 = vector.extract_strided_slice %341 {offsets = [0, 14], sizes = [2, 1], strides = [1, 1]} : vector<2x31xf32> to vector<2x1xf32>
    %c0_141 = arith.constant 0 : index
    %c127_142 = arith.constant 127 : index
    %414 = vector.load %arg4[%c0_141, %c127_142] : memref<2x384xf32, #tpu.memory_space<vmem>>, vector<2x128xf32>
    %415 = vector.broadcast %413 : vector<2x1xf32> to vector<2x128xf32>
    %416 = arith.mulf %415, %414 : vector<2x128xf32>
    %417 = arith.addf %412, %416 : vector<2x128xf32>
    %418 = vector.extract_strided_slice %341 {offsets = [0, 15], sizes = [2, 1], strides = [1, 1]} : vector<2x31xf32> to vector<2x1xf32>
    %c0_143 = arith.constant 0 : index
    %c128_144 = arith.constant 128 : index
    %419 = vector.load %arg4[%c0_143, %c128_144] : memref<2x384xf32, #tpu.memory_space<vmem>>, vector<2x128xf32>
    %420 = vector.broadcast %418 : vector<2x1xf32> to vector<2x128xf32>
    %421 = arith.mulf %420, %419 : vector<2x128xf32>
    %422 = arith.addf %417, %421 : vector<2x128xf32>
    %423 = vector.extract_strided_slice %341 {offsets = [0, 16], sizes = [2, 1], strides = [1, 1]} : vector<2x31xf32> to vector<2x1xf32>
    %c0_145 = arith.constant 0 : index
    %c129_146 = arith.constant 129 : index
    %424 = vector.load %arg4[%c0_145, %c129_146] : memref<2x384xf32, #tpu.memory_space<vmem>>, vector<2x128xf32>
    %425 = vector.broadcast %423 : vector<2x1xf32> to vector<2x128xf32>
    %426 = arith.mulf %425, %424 : vector<2x128xf32>
    %427 = arith.addf %422, %426 : vector<2x128xf32>
    %428 = vector.extract_strided_slice %341 {offsets = [0, 17], sizes = [2, 1], strides = [1, 1]} : vector<2x31xf32> to vector<2x1xf32>
    %c0_147 = arith.constant 0 : index
    %c130_148 = arith.constant 130 : index
    %429 = vector.load %arg4[%c0_147, %c130_148] : memref<2x384xf32, #tpu.memory_space<vmem>>, vector<2x128xf32>
    %430 = vector.broadcast %428 : vector<2x1xf32> to vector<2x128xf32>
    %431 = arith.mulf %430, %429 : vector<2x128xf32>
    %432 = arith.addf %427, %431 : vector<2x128xf32>
    %433 = vector.extract_strided_slice %341 {offsets = [0, 18], sizes = [2, 1], strides = [1, 1]} : vector<2x31xf32> to vector<2x1xf32>
    %c0_149 = arith.constant 0 : index
    %c131_150 = arith.constant 131 : index
    %434 = vector.load %arg4[%c0_149, %c131_150] : memref<2x384xf32, #tpu.memory_space<vmem>>, vector<2x128xf32>
    %435 = vector.broadcast %433 : vector<2x1xf32> to vector<2x128xf32>
    %436 = arith.mulf %435, %434 : vector<2x128xf32>
    %437 = arith.addf %432, %436 : vector<2x128xf32>
    %438 = vector.extract_strided_slice %341 {offsets = [0, 19], sizes = [2, 1], strides = [1, 1]} : vector<2x31xf32> to vector<2x1xf32>
    %c0_151 = arith.constant 0 : index
    %c132_152 = arith.constant 132 : index
    %439 = vector.load %arg4[%c0_151, %c132_152] : memref<2x384xf32, #tpu.memory_space<vmem>>, vector<2x128xf32>
    %440 = vector.broadcast %438 : vector<2x1xf32> to vector<2x128xf32>
    %441 = arith.mulf %440, %439 : vector<2x128xf32>
    %442 = arith.addf %437, %441 : vector<2x128xf32>
    %443 = vector.extract_strided_slice %341 {offsets = [0, 20], sizes = [2, 1], strides = [1, 1]} : vector<2x31xf32> to vector<2x1xf32>
    %c0_153 = arith.constant 0 : index
    %c133_154 = arith.constant 133 : index
    %444 = vector.load %arg4[%c0_153, %c133_154] : memref<2x384xf32, #tpu.memory_space<vmem>>, vector<2x128xf32>
    %445 = vector.broadcast %443 : vector<2x1xf32> to vector<2x128xf32>
    %446 = arith.mulf %445, %444 : vector<2x128xf32>
    %447 = arith.addf %442, %446 : vector<2x128xf32>
    %448 = vector.extract_strided_slice %341 {offsets = [0, 21], sizes = [2, 1], strides = [1, 1]} : vector<2x31xf32> to vector<2x1xf32>
    %c0_155 = arith.constant 0 : index
    %c134_156 = arith.constant 134 : index
    %449 = vector.load %arg4[%c0_155, %c134_156] : memref<2x384xf32, #tpu.memory_space<vmem>>, vector<2x128xf32>
    %450 = vector.broadcast %448 : vector<2x1xf32> to vector<2x128xf32>
    %451 = arith.mulf %450, %449 : vector<2x128xf32>
    %452 = arith.addf %447, %451 : vector<2x128xf32>
    %453 = vector.extract_strided_slice %341 {offsets = [0, 22], sizes = [2, 1], strides = [1, 1]} : vector<2x31xf32> to vector<2x1xf32>
    %c0_157 = arith.constant 0 : index
    %c135_158 = arith.constant 135 : index
    %454 = vector.load %arg4[%c0_157, %c135_158] : memref<2x384xf32, #tpu.memory_space<vmem>>, vector<2x128xf32>
    %455 = vector.broadcast %453 : vector<2x1xf32> to vector<2x128xf32>
    %456 = arith.mulf %455, %454 : vector<2x128xf32>
    %457 = arith.addf %452, %456 : vector<2x128xf32>
    %458 = vector.extract_strided_slice %341 {offsets = [0, 23], sizes = [2, 1], strides = [1, 1]} : vector<2x31xf32> to vector<2x1xf32>
    %c0_159 = arith.constant 0 : index
    %c136_160 = arith.constant 136 : index
    %459 = vector.load %arg4[%c0_159, %c136_160] : memref<2x384xf32, #tpu.memory_space<vmem>>, vector<2x128xf32>
    %460 = vector.broadcast %458 : vector<2x1xf32> to vector<2x128xf32>
    %461 = arith.mulf %460, %459 : vector<2x128xf32>
    %462 = arith.addf %457, %461 : vector<2x128xf32>
    %463 = vector.extract_strided_slice %341 {offsets = [0, 24], sizes = [2, 1], strides = [1, 1]} : vector<2x31xf32> to vector<2x1xf32>
    %c0_161 = arith.constant 0 : index
    %c137 = arith.constant 137 : index
    %464 = vector.load %arg4[%c0_161, %c137] : memref<2x384xf32, #tpu.memory_space<vmem>>, vector<2x128xf32>
    %465 = vector.broadcast %463 : vector<2x1xf32> to vector<2x128xf32>
    %466 = arith.mulf %465, %464 : vector<2x128xf32>
    %467 = arith.addf %462, %466 : vector<2x128xf32>
    %468 = vector.extract_strided_slice %341 {offsets = [0, 25], sizes = [2, 1], strides = [1, 1]} : vector<2x31xf32> to vector<2x1xf32>
    %c0_162 = arith.constant 0 : index
    %c138 = arith.constant 138 : index
    %469 = vector.load %arg4[%c0_162, %c138] : memref<2x384xf32, #tpu.memory_space<vmem>>, vector<2x128xf32>
    %470 = vector.broadcast %468 : vector<2x1xf32> to vector<2x128xf32>
    %471 = arith.mulf %470, %469 : vector<2x128xf32>
    %472 = arith.addf %467, %471 : vector<2x128xf32>
    %473 = vector.extract_strided_slice %341 {offsets = [0, 26], sizes = [2, 1], strides = [1, 1]} : vector<2x31xf32> to vector<2x1xf32>
    %c0_163 = arith.constant 0 : index
    %c139 = arith.constant 139 : index
    %474 = vector.load %arg4[%c0_163, %c139] : memref<2x384xf32, #tpu.memory_space<vmem>>, vector<2x128xf32>
    %475 = vector.broadcast %473 : vector<2x1xf32> to vector<2x128xf32>
    %476 = arith.mulf %475, %474 : vector<2x128xf32>
    %477 = arith.addf %472, %476 : vector<2x128xf32>
    %478 = vector.extract_strided_slice %341 {offsets = [0, 27], sizes = [2, 1], strides = [1, 1]} : vector<2x31xf32> to vector<2x1xf32>
    %c0_164 = arith.constant 0 : index
    %c140 = arith.constant 140 : index
    %479 = vector.load %arg4[%c0_164, %c140] : memref<2x384xf32, #tpu.memory_space<vmem>>, vector<2x128xf32>
    %480 = vector.broadcast %478 : vector<2x1xf32> to vector<2x128xf32>
    %481 = arith.mulf %480, %479 : vector<2x128xf32>
    %482 = arith.addf %477, %481 : vector<2x128xf32>
    %483 = vector.extract_strided_slice %341 {offsets = [0, 28], sizes = [2, 1], strides = [1, 1]} : vector<2x31xf32> to vector<2x1xf32>
    %c0_165 = arith.constant 0 : index
    %c141 = arith.constant 141 : index
    %484 = vector.load %arg4[%c0_165, %c141] : memref<2x384xf32, #tpu.memory_space<vmem>>, vector<2x128xf32>
    %485 = vector.broadcast %483 : vector<2x1xf32> to vector<2x128xf32>
    %486 = arith.mulf %485, %484 : vector<2x128xf32>
    %487 = arith.addf %482, %486 : vector<2x128xf32>
    %488 = vector.extract_strided_slice %341 {offsets = [0, 29], sizes = [2, 1], strides = [1, 1]} : vector<2x31xf32> to vector<2x1xf32>
    %c0_166 = arith.constant 0 : index
    %c142 = arith.constant 142 : index
    %489 = vector.load %arg4[%c0_166, %c142] : memref<2x384xf32, #tpu.memory_space<vmem>>, vector<2x128xf32>
    %490 = vector.broadcast %488 : vector<2x1xf32> to vector<2x128xf32>
    %491 = arith.mulf %490, %489 : vector<2x128xf32>
    %492 = arith.addf %487, %491 : vector<2x128xf32>
    %493 = vector.extract_strided_slice %341 {offsets = [0, 30], sizes = [2, 1], strides = [1, 1]} : vector<2x31xf32> to vector<2x1xf32>
    %c0_167 = arith.constant 0 : index
    %c143 = arith.constant 143 : index
    %494 = vector.load %arg4[%c0_167, %c143] : memref<2x384xf32, #tpu.memory_space<vmem>>, vector<2x128xf32>
    %495 = vector.broadcast %493 : vector<2x1xf32> to vector<2x128xf32>
    %496 = arith.mulf %495, %494 : vector<2x128xf32>
    %497 = arith.addf %492, %496 : vector<2x128xf32>
    %498 = vector.extract_strided_slice %274 {offsets = [0, 0], sizes = [2, 1], strides = [1, 1]} : vector<2x3xf32> to vector<2x1xf32>
    %499 = vector.broadcast %498 : vector<2x1xf32> to vector<2x128xf32>
    %500 = arith.mulf %499, %0 : vector<2x128xf32>
    %501 = vector.extract_strided_slice %274 {offsets = [0, 1], sizes = [2, 1], strides = [1, 1]} : vector<2x3xf32> to vector<2x1xf32>
    %502 = vector.broadcast %501 : vector<2x1xf32> to vector<2x128xf32>
    %503 = arith.mulf %502, %497 : vector<2x128xf32>
    %504 = arith.addf %500, %503 : vector<2x128xf32>
    %505 = vector.extract_strided_slice %274 {offsets = [0, 2], sizes = [2, 1], strides = [1, 1]} : vector<2x3xf32> to vector<2x1xf32>
    %cst_168 = arith.constant 1.000000e+00 : f32
    %506 = vector.broadcast %cst_168 : f32 to vector<2x128xf32>
    %507 = arith.subf %506, %339 : vector<2x128xf32>
    %508 = arith.mulf %0, %507 : vector<2x128xf32>
    %509 = vector.broadcast %505 : vector<2x1xf32> to vector<2x128xf32>
    %510 = arith.mulf %509, %508 : vector<2x128xf32>
    %511 = arith.addf %504, %510 : vector<2x128xf32>
    %c0_169 = arith.constant 0 : index
    %c0_170 = arith.constant 0 : index
    %512 = vector.load %arg2[%c0_169, %c0_170] : memref<4x128xf32, #tpu.memory_space<vmem>>, vector<2x128xf32>
    tpu.vector_store %arg2[%c0_169, %c0_170], %511 {strides = array<i32>} : memref<4x128xf32, #tpu.memory_space<vmem>>, vector<2x128xf32>,
    %c2 = arith.constant 2 : index
    %c0_171 = arith.constant 0 : index
    %513 = vector.load %arg2[%c2, %c0_171] : memref<4x128xf32, #tpu.memory_space<vmem>>, vector<2x128xf32>
    tpu.vector_store %arg2[%c2, %c0_171], %339 {strides = array<i32>} : memref<4x128xf32, #tpu.memory_space<vmem>>, vector<2x128xf32>,
    return
  }
}

</mosaic_0001>

<llo_original>
// kernel: tpu_custom_call.1
$region0: #{tpu_custom_call.1}
  #allocation0 [shape = 'u32[]', space=smem, size = 0x4, offset = 0x4, fixed_abs, tag = 'smem constant byte address 0x4 - core index']
  #allocation1 [shape = 'u32[144,128]{1,0:T(1,128)}', space=vmem, size = 0x12000, scoped, tag = 'internal scratch']
  #allocation2 [shape = 'f32[2,384]{1,0:T(2,128)}', space=vmem, size = 0xc00, scoped, tag = 'scratch operand']
  %s0 = inlined_call_operand.hbm [shape: f32[2,128], index: 0, kind: input, shape index: {}]
  %s1 = inlined_call_operand.hbm [shape: f32[160,128], index: 1, kind: input, shape index: {}]
  %s2 = inlined_call_operand.hbm [shape: f32[4,128], index: 2, kind: output, shape index: {0}]
  %s3 = inlined_call_operand.hbm [shape: f32[2,4], index: 3, kind: output, shape index: {1}]
  %4 = xla_tuple %s2, %s3
  %s5 = sld [smem:[#allocation0]]
  $region34: #{tpu_custom_call.1} parent=0
    _
  %s7 = ssub.s32 1, %s5
  %s8 = scalar_select 0, %s7, %s5
  $region1: #{tpu_custom_call.1} parent=0
    #allocation3 [shape = 'u8[1024]{0}', space=vmem, size = 0x400, scoped, tag = 'input window, operand 0, single buffered']
    #allocation4 [shape = 's32[1]{0}', space=sflag, size = 0x4, scoped, tag = 'scoped memory for tpu_custom_call.1']
    #allocation5 [shape = 's32[1]{0}', space=sflag, size = 0x4, scoped, tag = 'scoped memory for tpu_custom_call.1']
    #allocation6 [shape = 'u8[81920]{0}', space=vmem, size = 0x14000, scoped, tag = 'input window, operand 1, single buffered']
    #allocation7 [shape = 's32[1]{0}', space=sflag, size = 0x4, scoped, tag = 'scoped memory for tpu_custom_call.1']
    #allocation8 [shape = 'u8[2048]{0}', space=vmem, size = 0x800, scoped, tag = 'output window, operand 0, single buffered']
    #allocation9 [shape = 'u8[1024]{0}', space=vmem, size = 0x400, scoped, tag = 'output window, operand 1, single buffered']
    #allocation10 [shape = 's32[1]{0}', space=sflag, size = 0x4, scoped, tag = 'scoped memory for tpu_custom_call.1']
    %9 = vsyncpa [#allocation4], 0
    %10 = vsyncpa [#allocation7], 0
    %11 = vsyncpa [#allocation5], 0
    %12 = vsyncpa [#allocation10], 0
    // Predicated region
    $region2: #{tpu_custom_call.1} parent=1 // pred_check
      _
    $region3: #{tpu_custom_call.1} parent=1 // pred_check_branch
      %14 = sbr.rel (0) target = $region5
    $region4: #{tpu_custom_call.1} parent=1 // pred_region
      %s16 = ssub.s32 32, 32
      %17 = vsyncadd [#allocation4], %s16
      %s19 = sshll.u32 [#allocation3], 4
      %s20 = int_to_ptr.vmem [resolvable:$true] %s19
      %22 = dma.hbm_to_vmem [thread:$0]  %s0, 32, %s20, [#allocation4]
    $region5: #{tpu_custom_call.1} parent=1 // pred_fallthru
      _
    // Predicated region
    $region6: #{tpu_custom_call.1} parent=1 // pred_check
      _
    $region7: #{tpu_custom_call.1} parent=1 // pred_check_branch
      %24 = sbr.rel (0) target = $region9
    $region8: #{tpu_custom_call.1} parent=1 // pred_region
      %s26 = ssub.s32 2560, 2560
      %27 = vsyncadd [#allocation7], %s26
      %s28 = sshll.u32 [#allocation6], 4
      %s29 = int_to_ptr.vmem [resolvable:$true] %s28
      %34 = dma.hbm_to_vmem [thread:$0]  %s1, 2560, %s29, [#allocation7], 128, 128, 8
    $region9: #{tpu_custom_call.1} parent=1 // pred_fallthru
      _
    // Predicated region
    $region10: #{tpu_custom_call.1} parent=1 // pred_check
      _
    $region11: #{tpu_custom_call.1} parent=1 // pred_check_branch
      %36 = sbr.rel (0) target = $region13
    $region12: #{tpu_custom_call.1} parent=1 // pred_region
      %37 = dma.done [#allocation4], 32
    $region13: #{tpu_custom_call.1} parent=1 // pred_fallthru
      _
    // Predicated region
    $region14: #{tpu_custom_call.1} parent=1 // pred_check
      _
    $region15: #{tpu_custom_call.1} parent=1 // pred_check_branch
      %39 = sbr.rel (0) target = $region17
    $region16: #{tpu_custom_call.1} parent=1 // pred_region
      %40 = dma.done [#allocation7], 2560
    $region17: #{tpu_custom_call.1} parent=1 // pred_fallthru
      _
    %v41 = vld [vmem:[#allocation3] sm:$0x3]
    %vm42 = vcmask 1042312
    %43 = vst.msk [vmem:[#allocation2] sm:$0x3] %vm42, 0.0
    %vm44 = vcmask 115712
    %45 = vst.msk [vmem:[#allocation2 + $0x4] sm:$0x3] %vm44, 0.0
    %46 = vst [vmem:[#allocation2 + $0x2] sm:$0x3] %v41
    %v47 = vld [vmem:[#allocation6] sm:$0xff]
    %v48 = vld [vmem:[#allocation2] sm:$0x5]
    %50 = vset.pattern.permute.xlu0 0
    %51 = vperm.xlu0 %50, %v47
    %v52 = vpop.permute.xlu0 %51
    %v55 = vlaneseq
    %v56 = vshrl.u32 %v55, 7
    %v57 = vsub.s32 0, %v56
    %v58 = vrot.slane %v48, %v57
    %v59 = vlaneseq
    %v60 = vshrl.u32 %v59, 7
    %v61 = vsub.s32 2, %v60
    %v62 = vrot.slane %v48, %v61
    %v65 = vlaneseq
    %v66 = vshrl.u32 %v65, 7
    %v67 = vsub.s32 0, %v66
    %v68 = vrot.slane %v58, %v67
    %v69 = vlaneseq
    %v70 = vshrl.u32 %v69, 7
    %v71 = vsub.s32 0, %v70
    %v72 = vrot.slane %v62, %v71
    %v73 = vmul.f32 %v52, %v68
    %v74 = vmul.f32 %v52, %v72
    %v75 = vadd.f32 %v73, 0.0
    %v76 = vadd.f32 %v74, 0.0
    %77 = vset.pattern.permute.xlu0 1
    %78 = vperm.xlu0 %77, %v47
    %v79 = vpop.permute.xlu0 %78
    %v81 = vmul.f32 %v79, %v68
    %v82 = vmul.f32 %v79, %v72
    %85 = vrot.lane.b32.xlu0 %v81, 127
    %v86 = vpop.permute.xlu0 %85
    %87 = vrot.lane.b32.xlu0 %v82, 127
    %v88 = vpop.permute.xlu0 %87
    %vm89 = vcmask 1039360
    %v90 = vsel %vm89, %v86, %v88
    %v93 = vadd.f32 %v75, %v90
    %v94 = vadd.f32 %v76, %v88
    %95 = vset.pattern.permute.xlu0 2
    %96 = vperm.xlu0 %95, %v47
    %v97 = vpop.permute.xlu0 %96
    %v99 = vmul.f32 %v97, %v68
    %v100 = vmul.f32 %v97, %v72
    %103 = vrot.lane.b32.xlu0 %v99, 126
    %v104 = vpop.permute.xlu0 %103
    %105 = vrot.lane.b32.xlu0 %v100, 126
    %v106 = vpop.permute.xlu0 %105
    %vm107 = vcmask 1031168
    %v108 = vsel %vm107, %v104, %v106
    %v111 = vadd.f32 %v93, %v108
    %v112 = vadd.f32 %v94, %v106
    %113 = vset.pattern.permute.xlu0 3
    %114 = vperm.xlu0 %113, %v47
    %v115 = vpop.permute.xlu0 %114
    %v117 = vmul.f32 %v115, %v68
    %v118 = vmul.f32 %v115, %v72
    %121 = vrot.lane.b32.xlu0 %v117, 125
    %v122 = vpop.permute.xlu0 %121
    %123 = vrot.lane.b32.xlu0 %v118, 125
    %v124 = vpop.permute.xlu0 %123
    %vm125 = vcmask 1022976
    %v126 = vsel %vm125, %v122, %v124
    %v129 = vadd.f32 %v111, %v126
    %v130 = vadd.f32 %v112, %v124
    %131 = vset.pattern.permute.xlu0 4
    %132 = vperm.xlu0 %131, %v47
    %v133 = vpop.permute.xlu0 %132
    %v135 = vmul.f32 %v133, %v68
    %v136 = vmul.f32 %v133, %v72
    %139 = vrot.lane.b32.xlu0 %v135, 124
    %v140 = vpop.permute.xlu0 %139
    %141 = vrot.lane.b32.xlu0 %v136, 124
    %v142 = vpop.permute.xlu0 %141
    %vm143 = vcmask 1014784
    %v144 = vsel %vm143, %v140, %v142
    %v147 = vadd.f32 %v129, %v144
    %v148 = vadd.f32 %v130, %v142
    %149 = vset.pattern.permute.xlu0 5
    %150 = vperm.xlu0 %149, %v47
    %v151 = vpop.permute.xlu0 %150
    %v153 = vmul.f32 %v151, %v68
    %v154 = vmul.f32 %v151, %v72
    %157 = vrot.lane.b32.xlu0 %v153, 123
    %v158 = vpop.permute.xlu0 %157
    %159 = vrot.lane.b32.xlu0 %v154, 123
    %v160 = vpop.permute.xlu0 %159
    %vm161 = vcmask 1006592
    %v162 = vsel %vm161, %v158, %v160
    %v165 = vadd.f32 %v147, %v162
    %v166 = vadd.f32 %v148, %v160
    %167 = vset.pattern.permute.xlu0 6
    %168 = vperm.xlu0 %167, %v47
    %v169 = vpop.permute.xlu0 %168
    %v171 = vmul.f32 %v169, %v68
    %v172 = vmul.f32 %v169, %v72
    %175 = vrot.lane.b32.xlu0 %v171, 122
    %v176 = vpop.permute.xlu0 %175
    %177 = vrot.lane.b32.xlu0 %v172, 122
    %v178 = vpop.permute.xlu0 %177
    %vm179 = vcmask 998400
    %v180 = vsel %vm179, %v176, %v178
    %v183 = vadd.f32 %v165, %v180
    %v184 = vadd.f32 %v166, %v178
    %v185 = vld [vmem:[#allocation2 + $0x2] sm:$0x1]
    %186 = vset.pattern.permute.xlu0 7
    %187 = vperm.xlu0 %186, %v47
    %v188 = vpop.permute.xlu0 %187
    %v190 = vlaneseq
    %v191 = vshrl.u32 %v190, 7
    %v192 = vsub.s32 0, %v191
    %v193 = vrot.slane %v185, %v192
    %v194 = vmul.f32 %v188, %v193
    %196 = vrot.lane.b32.xlu0 %v194, 121
    %v197 = vpop.permute.xlu0 %196
    %v199 = vadd.f32 %v183, %v197
    %v200 = vadd.f32 %v184, %v197
    %v201 = vld [vmem:[#allocation2 + $0x2] sm:$0x5]
    %202 = vset.pattern.permute.xlu0 8
    %203 = vperm.xlu0 %202, %v47
    %v204 = vpop.permute.xlu0 %203
    %v207 = vlaneseq
    %v208 = vshrl.u32 %v207, 7
    %v209 = vsub.s32 0, %v208
    %v210 = vrot.slane %v201, %v209
    %v211 = vlaneseq
    %v212 = vshrl.u32 %v211, 7
    %v213 = vsub.s32 2, %v212
    %v214 = vrot.slane %v201, %v213
    %v217 = vlaneseq
    %v218 = vshrl.u32 %v217, 7
    %v219 = vsub.s32 0, %v218
    %v220 = vrot.slane %v210, %v219
    %v221 = vlaneseq
    %v222 = vshrl.u32 %v221, 7
    %v223 = vsub.s32 0, %v222
    %v224 = vrot.slane %v214, %v223
    %v225 = vmul.f32 %v204, %v220
    %v226 = vmul.f32 %v204, %v224
    %229 = vrot.lane.b32.xlu0 %v225, 120
    %v230 = vpop.permute.xlu0 %229
    %231 = vrot.lane.b32.xlu0 %v226, 120
    %v232 = vpop.permute.xlu0 %231
    %vm233 = vcmask 982016
    %v234 = vsel %vm233, %v230, %v232
    %v237 = vadd.f32 %v199, %v230
    %v238 = vadd.f32 %v200, %v234
    %239 = vset.pattern.permute.xlu0 9
    %240 = vperm.xlu0 %239, %v47
    %v241 = vpop.permute.xlu0 %240
    %v243 = vmul.f32 %v241, %v220
    %v244 = vmul.f32 %v241, %v224
    %247 = vrot.lane.b32.xlu0 %v243, 119
    %v248 = vpop.permute.xlu0 %247
    %249 = vrot.lane.b32.xlu0 %v244, 119
    %v250 = vpop.permute.xlu0 %249
    %vm251 = vcmask 973824
    %v252 = vsel %vm251, %v248, %v250
    %v255 = vadd.f32 %v237, %v248
    %v256 = vadd.f32 %v238, %v252
    %257 = vset.pattern.permute.xlu0 10
    %258 = vperm.xlu0 %257, %v47
    %v259 = vpop.permute.xlu0 %258
    %v261 = vmul.f32 %v259, %v220
    %v262 = vmul.f32 %v259, %v224
    %265 = vrot.lane.b32.xlu0 %v261, 118
    %v266 = vpop.permute.xlu0 %265
    %267 = vrot.lane.b32.xlu0 %v262, 118
    %v268 = vpop.permute.xlu0 %267
    %vm269 = vcmask 965632
    %v270 = vsel %vm269, %v266, %v268
    %v273 = vadd.f32 %v255, %v266
    %v274 = vadd.f32 %v256, %v270
    %275 = vset.pattern.permute.xlu0 11
    %276 = vperm.xlu0 %275, %v47
    %v277 = vpop.permute.xlu0 %276
    %v279 = vmul.f32 %v277, %v220
    %v280 = vmul.f32 %v277, %v224
    %283 = vrot.lane.b32.xlu0 %v279, 117
    %v284 = vpop.permute.xlu0 %283
    %285 = vrot.lane.b32.xlu0 %v280, 117
    %v286 = vpop.permute.xlu0 %285
    %vm287 = vcmask 957440
    %v288 = vsel %vm287, %v284, %v286
    %v291 = vadd.f32 %v273, %v284
    %v292 = vadd.f32 %v274, %v288
    %293 = vset.pattern.permute.xlu0 12
    %294 = vperm.xlu0 %293, %v47
    %v295 = vpop.permute.xlu0 %294
    %v297 = vmul.f32 %v295, %v220
    %v298 = vmul.f32 %v295, %v224
    %301 = vrot.lane.b32.xlu0 %v297, 116
    %v302 = vpop.permute.xlu0 %301
    %303 = vrot.lane.b32.xlu0 %v298, 116
    %v304 = vpop.permute.xlu0 %303
    %vm305 = vcmask 949248
    %v306 = vsel %vm305, %v302, %v304
    %v309 = vadd.f32 %v291, %v302
    %v310 = vadd.f32 %v292, %v306
    %311 = vset.pattern.permute.xlu0 13
    %312 = vperm.xlu0 %311, %v47
    %v313 = vpop.permute.xlu0 %312
    %v315 = vmul.f32 %v313, %v220
    %v316 = vmul.f32 %v313, %v224
    %319 = vrot.lane.b32.xlu0 %v315, 115
    %v320 = vpop.permute.xlu0 %319
    %321 = vrot.lane.b32.xlu0 %v316, 115
    %v322 = vpop.permute.xlu0 %321
    %vm323 = vcmask 941056
    %v324 = vsel %vm323, %v320, %v322
    %v327 = vadd.f32 %v309, %v320
    %v328 = vadd.f32 %v310, %v324
    %329 = vset.pattern.permute.xlu0 14
    %330 = vperm.xlu0 %329, %v47
    %v331 = vpop.permute.xlu0 %330
    %v333 = vmul.f32 %v331, %v220
    %v334 = vmul.f32 %v331, %v224
    %337 = vrot.lane.b32.xlu0 %v333, 114
    %v338 = vpop.permute.xlu0 %337
    %339 = vrot.lane.b32.xlu0 %v334, 114
    %v340 = vpop.permute.xlu0 %339
    %vm341 = vcmask 932864
    %v342 = vsel %vm341, %v338, %v340
    %v345 = vadd.f32 %v327, %v338
    %v346 = vadd.f32 %v328, %v342
    %347 = vset.pattern.permute.xlu0 15
    %348 = vperm.xlu0 %347, %v47
    %v349 = vpop.permute.xlu0 %348
    %v351 = vadd.f32 %v345, %v349
    %v352 = vadd.f32 %v346, %v349
    %v353 = vld [vmem:[#allocation2 + $0x1] sm:$0x5]
    %v355 = vlaneseq
    %v356 = vshrl.u32 %v355, 7
    %v357 = vsub.s32 0, %v356
    %v358 = vrot.slane %v353, %v357
    %v359 = vlaneseq
    %v360 = vshrl.u32 %v359, 7
    %v361 = vsub.s32 2, %v360
    %v362 = vrot.slane %v353, %v361
    %v365 = vlaneseq
    %v366 = vshrl.u32 %v365, 7
    %v367 = vsub.s32 0, %v366
    %v368 = vrot.slane %v358, %v367
    %v369 = vlaneseq
    %v370 = vshrl.u32 %v369, 7
    %v371 = vsub.s32 0, %v370
    %v372 = vrot.slane %v362, %v371
    %v373 = vmul.f32 %v52, %v368
    %v374 = vmul.f32 %v52, %v372
    %v375 = vadd.f32 %v373, 0.0
    %v376 = vadd.f32 %v374, 0.0
    %v377 = vmul.f32 %v79, %v368
    %v378 = vmul.f32 %v79, %v372
    %381 = vrot.lane.b32.xlu0 %v377, 127
    %v382 = vpop.permute.xlu0 %381
    %383 = vrot.lane.b32.xlu0 %v378, 127
    %v384 = vpop.permute.xlu0 %383
    %v385 = vsel %vm89, %v382, %v384
    %v388 = vadd.f32 %v375, %v385
    %v389 = vadd.f32 %v376, %v384
    %v390 = vmul.f32 %v97, %v368
    %v391 = vmul.f32 %v97, %v372
    %394 = vrot.lane.b32.xlu0 %v390, 126
    %v395 = vpop.permute.xlu0 %394
    %396 = vrot.lane.b32.xlu0 %v391, 126
    %v397 = vpop.permute.xlu0 %396
    %v398 = vsel %vm107, %v395, %v397
    %v401 = vadd.f32 %v388, %v398
    %v402 = vadd.f32 %v389, %v397
    %v403 = vmul.f32 %v115, %v368
    %v404 = vmul.f32 %v115, %v372
    %407 = vrot.lane.b32.xlu0 %v403, 125
    %v408 = vpop.permute.xlu0 %407
    %409 = vrot.lane.b32.xlu0 %v404, 125
    %v410 = vpop.permute.xlu0 %409
    %v411 = vsel %vm125, %v408, %v410
    %v414 = vadd.f32 %v401, %v411
    %v415 = vadd.f32 %v402, %v410
    %v416 = vmul.f32 %v133, %v368
    %v417 = vmul.f32 %v133, %v372
    %420 = vrot.lane.b32.xlu0 %v416, 124
    %v421 = vpop.permute.xlu0 %420
    %422 = vrot.lane.b32.xlu0 %v417, 124
    %v423 = vpop.permute.xlu0 %422
    %v424 = vsel %vm143, %v421, %v423
    %v427 = vadd.f32 %v414, %v424
    %v428 = vadd.f32 %v415, %v423
    %v429 = vmul.f32 %v151, %v368
    %v430 = vmul.f32 %v151, %v372
    %433 = vrot.lane.b32.xlu0 %v429, 123
    %v434 = vpop.permute.xlu0 %433
    %435 = vrot.lane.b32.xlu0 %v430, 123
    %v436 = vpop.permute.xlu0 %435
    %v437 = vsel %vm161, %v434, %v436
    %v440 = vadd.f32 %v427, %v437
    %v441 = vadd.f32 %v428, %v436
    %v442 = vmul.f32 %v169, %v368
    %v443 = vmul.f32 %v169, %v372
    %446 = vrot.lane.b32.xlu0 %v442, 122
    %v447 = vpop.permute.xlu0 %446
    %448 = vrot.lane.b32.xlu0 %v443, 122
    %v449 = vpop.permute.xlu0 %448
    %v450 = vsel %vm179, %v447, %v449
    %v453 = vadd.f32 %v440, %v450
    %v454 = vadd.f32 %v441, %v449
    %v455 = vld [vmem:[#allocation2 + $0x3] sm:$0x1]
    %v456 = vlaneseq
    %v457 = vshrl.u32 %v456, 7
    %v458 = vsub.s32 0, %v457
    %v459 = vrot.slane %v455, %v458
    %v460 = vmul.f32 %v188, %v459
    %462 = vrot.lane.b32.xlu0 %v460, 121
    %v463 = vpop.permute.xlu0 %462
    %v465 = vadd.f32 %v453, %v463
    %v466 = vadd.f32 %v454, %v463
    %v467 = vld [vmem:[#allocation2 + $0x3] sm:$0x5]
    %v469 = vlaneseq
    %v470 = vshrl.u32 %v469, 7
    %v471 = vsub.s32 0, %v470
    %v472 = vrot.slane %v467, %v471
    %v473 = vlaneseq
    %v474 = vshrl.u32 %v473, 7
    %v475 = vsub.s32 2, %v474
    %v476 = vrot.slane %v467, %v475
    %v479 = vlaneseq
    %v480 = vshrl.u32 %v479, 7
    %v481 = vsub.s32 0, %v480
    %v482 = vrot.slane %v472, %v481
    %v483 = vlaneseq
    %v484 = vshrl.u32 %v483, 7
    %v485 = vsub.s32 0, %v484
    %v486 = vrot.slane %v476, %v485
    %v487 = vmul.f32 %v204, %v482
    %v488 = vmul.f32 %v204, %v486
    %491 = vrot.lane.b32.xlu0 %v487, 120
    %v492 = vpop.permute.xlu0 %491
    %493 = vrot.lane.b32.xlu0 %v488, 120
    %v494 = vpop.permute.xlu0 %493
    %v495 = vsel %vm233, %v492, %v494
    %v498 = vadd.f32 %v465, %v492
    %v499 = vadd.f32 %v466, %v495
    %v500 = vmul.f32 %v241, %v482
    %v501 = vmul.f32 %v241, %v486
    %504 = vrot.lane.b32.xlu0 %v500, 119
    %v505 = vpop.permute.xlu0 %504
    %506 = vrot.lane.b32.xlu0 %v501, 119
    %v507 = vpop.permute.xlu0 %506
    %v508 = vsel %vm251, %v505, %v507
    %v511 = vadd.f32 %v498, %v505
    %v512 = vadd.f32 %v499, %v508
    %v513 = vmul.f32 %v259, %v482
    %v514 = vmul.f32 %v259, %v486
    %517 = vrot.lane.b32.xlu0 %v513, 118
    %v518 = vpop.permute.xlu0 %517
    %519 = vrot.lane.b32.xlu0 %v514, 118
    %v520 = vpop.permute.xlu0 %519
    %v521 = vsel %vm269, %v518, %v520
    %v524 = vadd.f32 %v511, %v518
    %v525 = vadd.f32 %v512, %v521
    %v526 = vmul.f32 %v277, %v482
    %v527 = vmul.f32 %v277, %v486
    %530 = vrot.lane.b32.xlu0 %v526, 117
    %v531 = vpop.permute.xlu0 %530
    %532 = vrot.lane.b32.xlu0 %v527, 117
    %v533 = vpop.permute.xlu0 %532
    %v534 = vsel %vm287, %v531, %v533
    %v537 = vadd.f32 %v524, %v531
    %v538 = vadd.f32 %v525, %v534
    %v539 = vmul.f32 %v295, %v482
    %v540 = vmul.f32 %v295, %v486
    %543 = vrot.lane.b32.xlu0 %v539, 116
    %v544 = vpop.permute.xlu0 %543
    %545 = vrot.lane.b32.xlu0 %v540, 116
    %v546 = vpop.permute.xlu0 %545
    %v547 = vsel %vm305, %v544, %v546
    %v550 = vadd.f32 %v537, %v544
    %v551 = vadd.f32 %v538, %v547
    %v552 = vmul.f32 %v313, %v482
    %v553 = vmul.f32 %v313, %v486
    %556 = vrot.lane.b32.xlu0 %v552, 115
    %v557 = vpop.permute.xlu0 %556
    %558 = vrot.lane.b32.xlu0 %v553, 115
    %v559 = vpop.permute.xlu0 %558
    %v560 = vsel %vm323, %v557, %v559
    %v563 = vadd.f32 %v550, %v557
    %v564 = vadd.f32 %v551, %v560
    %v565 = vmul.f32 %v331, %v482
    %v566 = vmul.f32 %v331, %v486
    %569 = vrot.lane.b32.xlu0 %v565, 114
    %v570 = vpop.permute.xlu0 %569
    %571 = vrot.lane.b32.xlu0 %v566, 114
    %v572 = vpop.permute.xlu0 %571
    %v573 = vsel %vm341, %v570, %v572
    %v576 = vadd.f32 %v563, %v570
    %v577 = vadd.f32 %v564, %v573
    %v578 = vadd.f32 %v576, %v349
    %v579 = vadd.f32 %v577, %v349
    %582 = vrot.lane.b32.xlu0 %v351, 7
    %v583 = vpop.permute.xlu0 %582
    %584 = vrot.lane.b32.xlu0 %v352, 7
    %v585 = vpop.permute.xlu0 %584
    %vm586 = vcmask 56320
    %v587 = vsel %vm586, %v583, %v585
    %589 = vadd.xlane.f32.xlu0 %v587
    %v590 = vpop.xlane.xlu0 %589
    %593 = vrot.lane.b32.xlu0 %v578, 7
    %v594 = vpop.permute.xlu0 %593
    %595 = vrot.lane.b32.xlu0 %v579, 7
    %v596 = vpop.permute.xlu0 %595
    %v597 = vsel %vm586, %v594, %v596
    %599 = vadd.xlane.f32.xlu0 %v597
    %v600 = vpop.xlane.xlu0 %599
    %v601 = vadd.f32 %v590, %v600
    %v602 = vmul.f32 %v601, 0.00390625
    %v603 = vsub.f32 %v351, %v602
    %v604 = vsub.f32 %v352, %v602
    %v605 = vmul.f32 %v603, %v603
    %v606 = vmul.f32 %v604, %v604
    %609 = vrot.lane.b32.xlu0 %v605, 7
    %v610 = vpop.permute.xlu0 %609
    %611 = vrot.lane.b32.xlu0 %v606, 7
    %v612 = vpop.permute.xlu0 %611
    %v613 = vsel %vm586, %v610, %v612
    %615 = vadd.xlane.f32.xlu0 %v613
    %v616 = vpop.xlane.xlu0 %615
    %v617 = vadd.f32 %v616, 0.0
    %v618 = vsub.f32 %v578, %v602
    %v619 = vsub.f32 %v579, %v602
    %v620 = vmul.f32 %v618, %v618
    %v621 = vmul.f32 %v619, %v619
    %624 = vrot.lane.b32.xlu0 %v620, 7
    %v625 = vpop.permute.xlu0 %624
    %626 = vrot.lane.b32.xlu0 %v621, 7
    %v627 = vpop.permute.xlu0 %626
    %v628 = vsel %vm586, %v625, %v627
    %630 = vadd.xlane.f32.xlu0 %v628
    %v631 = vpop.xlane.xlu0 %630
    %v632 = vadd.f32 %v617, %v631
    %v633 = vmul.f32 %v632, 0.00390625
    %v634 = vadd.f32 %v633, 1e-05
    %v635 = vrsqrt.pop %v634
    %v636 = vmul.f32 %v635, %v47
    %638 = vset.pattern.permute.xlu0 16
    %639 = vperm.xlu0 %638, %v636
    %v640 = vpop.permute.xlu0 %639
    %v642 = vmul.f32 %v603, %v640
    %v643 = vmul.f32 %v604, %v640
    %644 = vset.pattern.permute.xlu0 17
    %645 = vperm.xlu0 %644, %v47
    %v646 = vpop.permute.xlu0 %645
    %v648 = vadd.f32 %v642, %v646
    %v649 = vadd.f32 %v643, %v646
    %v650 = vmax.f32 %v648, 0.0
    %v651 = vmax.f32 %v649, 0.0
    %654 = vrot.lane.b32.xlu0 %v650, 7
    %v655 = vpop.permute.xlu0 %654
    %656 = vrot.lane.b32.xlu0 %v651, 7
    %v657 = vpop.permute.xlu0 %656
    %v658 = vsel %vm586, %v655, %v657
    %660 = vadd.xlane.f32.xlu0 %v658
    %v661 = vpop.xlane.xlu0 %660
    %v662 = vmul.f32 %v661, 0.0078125
    %v663 = vmul.f32 %v618, %v640
    %v664 = vmul.f32 %v619, %v640
    %v665 = vadd.f32 %v663, %v646
    %v666 = vadd.f32 %v664, %v646
    %v667 = vmax.f32 %v665, 0.0
    %v668 = vmax.f32 %v666, 0.0
    %671 = vrot.lane.b32.xlu0 %v667, 7
    %v672 = vpop.permute.xlu0 %671
    %673 = vrot.lane.b32.xlu0 %v668, 7
    %v674 = vpop.permute.xlu0 %673
    %v675 = vsel %vm586, %v672, %v674
    %677 = vadd.xlane.f32.xlu0 %v675
    %v678 = vpop.xlane.xlu0 %677
    %v679 = vmul.f32 %v678, 0.0078125
    %v680 = vld [vmem:[#allocation6 + $0x8] sm:$0xff]
    %v681 = vld [vmem:[#allocation6 + $0x10] sm:$0xff]
    %v682 = vld [vmem:[#allocation6 + $0x18] sm:$0x3]
    %v683 = vld [vmem:[#allocation6 + $0x20] sm:$0x1]
    %v684 = vld [vmem:[#allocation6 + $0x21] sm:$0x1]
    %v685 = vld [vmem:[#allocation6 + $0x28] sm:$0xff]
    %v686 = vld [vmem:[#allocation6 + $0x30] sm:$0xff]
    %v687 = vld [vmem:[#allocation6 + $0x38] sm:$0xff]
    %689 = vset.pattern.permute.xlu0 0
    %690 = vperm.xlu0 %689, %v662
    %v691 = vpop.permute.xlu0 %690
    %694 = vset.pattern.permute.xlu0 0
    %695 = vperm.xlu0 %694, %v679
    %v696 = vpop.permute.xlu0 %695
    %v698 = vmul.f32 %v691, %v680
    %v699 = vmul.f32 %v696, %v681
    %v700 = vlaneseq
    %v701 = vshrl.u32 %v700, 7
    %v702 = vsub.s32 0, %v701
    %v703 = vrot.slane %v683, %v702
    %vm704 = vcmask 130048
    %v706 = vsel %vm704, %v682, 0
    %708 = vmatprep.subr.mxu0 0.0
    %709 = vmatpush1.msra.mxu0 %v698
    %710 = vmatprep.subr.mxu0 0.0
    %711 = vmatpush1.msra.mxu0 %v699
    %712 = vmatprep.subr.mxu0 0.0
    %713 = vmatpush1.msra.mxu0 0.0
    %714 = vmatprep.subr.mxu0 0.0
    %715 = vmatpush1.msra.mxu0 0.0
    %716 = vmatprep.subr.mxu0 0.0
    %717 = vmatpush1.msra.mxu0 0.0
    %718 = vmatprep.subr.mxu0 0.0
    %719 = vmatpush1.msra.mxu0 0.0
    %720 = vmatprep.subr.mxu0 0.0
    %721 = vmatpush1.msra.mxu0 0.0
    %722 = vmatprep.subr.mxu0 0.0
    %723 = vmatpush1.msra.mxu0 0.0
    %724 = vmatprep.subr.mxu0 0.0
    %725 = vmatpush1.msra.mxu0 0.0
    %726 = vmatprep.subr.mxu0 0.0
    %727 = vmatpush1.msra.mxu0 0.0
    %728 = vmatprep.subr.mxu0 0.0
    %729 = vmatpush1.msra.mxu0 0.0
    %730 = vmatprep.subr.mxu0 0.0
    %731 = vmatpush1.msra.mxu0 0.0
    %732 = vmatprep.subr.mxu0 0.0
    %733 = vmatpush1.msra.mxu0 0.0
    %734 = vmatprep.subr.mxu0 0.0
    %735 = vmatpush1.msra.mxu0 0.0
    %736 = vmatprep.subr.mxu0 0.0
    %737 = vmatpush1.msra.mxu0 0.0
    %738 = vmatprep.subr.mxu0 0.0
    %739 = vmatpush1.msra.mxu0 0.0
    %740 = vmatprep.subr.mxu0 0.0
    %741 = vmatpush1.msra.mxu0 0.0
    %742 = vmatprep.subr.mxu0 0.0
    %743 = vmatpush1.msra.mxu0 0.0
    %744 = vmatprep.subr.mxu0 0.0
    %745 = vmatpush1.msra.mxu0 0.0
    %746 = vmatprep.subr.mxu0 0.0
    %747 = vmatpush1.msra.mxu0 0.0
    %748 = vmatprep.subr.mxu0 0.0
    %749 = vmatpush1.msra.mxu0 0.0
    %750 = vmatprep.subr.mxu0 0.0
    %751 = vmatpush1.msra.mxu0 0.0
    %752 = vmatprep.subr.mxu0 0.0
    %753 = vmatpush1.msra.mxu0 0.0
    %754 = vmatprep.subr.mxu0 0.0
    %755 = vmatpush1.msra.mxu0 0.0
    %756 = vmatprep.subr.mxu0 0.0
    %757 = vmatpush1.msra.mxu0 0.0
    %758 = vmatprep.subr.mxu0 0.0
    %759 = vmatpush1.msra.mxu0 0.0
    %760 = vmatprep.subr.mxu0 0.0
    %761 = vmatpush1.msra.mxu0 0.0
    %762 = vmatprep.subr.mxu0 0.0
    %763 = vmatpush1.msra.mxu0 0.0
    %764 = vmatprep.subr.mxu0 0.0
    %765 = vmatpush1.msra.mxu0 0.0
    %766 = vmatprep.subr.mxu0 0.0
    %767 = vmatpush1.msra.mxu0 0.0
    %768 = vmatprep.subr.mxu0 0.0
    %769 = vmatpush1.msra.mxu0 0.0
    %770 = vmatprep.subr.mxu0 0.0
    %771 = vmatpush1.msra.mxu0 0.0
    %772 = vmatprep.mubr.f32.mxu0 0.0
    %773 = vmatmul.mubr.f32.gmra.mrb[0].mxu0 %v706
    %v774 = vpop.f32.mrb[0].mxu0
    %v775 = vadd.f32 %v703, %v774
    %v776 = vpop.f32.mrb[0].mxu0
    %777 = vdwg.mxu0
    %v778 = vmax.f32 %v775, 0.0
    %v779 = vlaneseq
    %v780 = vshrl.u32 %v779, 7
    %v781 = vsub.s32 0, %v780
    %v782 = vrot.slane %v684, %v781
    %vm783 = vcmask 195584
    %v785 = vsel %vm783, %v778, 0
    %787 = vmatprep.subr.mxu0 0.0
    %788 = vmatpush1.msra.mxu0 %v685
    %789 = vmatprep.subr.mxu0 0.0
    %790 = vmatpush1.msra.mxu0 %v686
    %791 = vmatprep.subr.mxu0 0.0
    %792 = vmatpush1.msra.mxu0 %v687
    %793 = vmatprep.subr.mxu0 0.0
    %794 = vmatpush1.msra.mxu0 0.0
    %795 = vmatprep.subr.mxu0 0.0
    %796 = vmatpush1.msra.mxu0 0.0
    %797 = vmatprep.subr.mxu0 0.0
    %798 = vmatpush1.msra.mxu0 0.0
    %799 = vmatprep.subr.mxu0 0.0
    %800 = vmatpush1.msra.mxu0 0.0
    %801 = vmatprep.subr.mxu0 0.0
    %802 = vmatpush1.msra.mxu0 0.0
    %803 = vmatprep.subr.mxu0 0.0
    %804 = vmatpush1.msra.mxu0 0.0
    %805 = vmatprep.subr.mxu0 0.0
    %806 = vmatpush1.msra.mxu0 0.0
    %807 = vmatprep.subr.mxu0 0.0
    %808 = vmatpush1.msra.mxu0 0.0
    %809 = vmatprep.subr.mxu0 0.0
    %810 = vmatpush1.msra.mxu0 0.0
    %811 = vmatprep.subr.mxu0 0.0
    %812 = vmatpush1.msra.mxu0 0.0
    %813 = vmatprep.subr.mxu0 0.0
    %814 = vmatpush1.msra.mxu0 0.0
    %815 = vmatprep.subr.mxu0 0.0
    %816 = vmatpush1.msra.mxu0 0.0
    %817 = vmatprep.subr.mxu0 0.0
    %818 = vmatpush1.msra.mxu0 0.0
    %819 = vmatprep.subr.mxu0 0.0
    %820 = vmatpush1.msra.mxu0 0.0
    %821 = vmatprep.subr.mxu0 0.0
    %822 = vmatpush1.msra.mxu0 0.0
    %823 = vmatprep.subr.mxu0 0.0
    %824 = vmatpush1.msra.mxu0 0.0
    %825 = vmatprep.subr.mxu0 0.0
    %826 = vmatpush1.msra.mxu0 0.0
    %827 = vmatprep.subr.mxu0 0.0
    %828 = vmatpush1.msra.mxu0 0.0
    %829 = vmatprep.subr.mxu0 0.0
    %830 = vmatpush1.msra.mxu0 0.0
    %831 = vmatprep.subr.mxu0 0.0
    %832 = vmatpush1.msra.mxu0 0.0
    %833 = vmatprep.subr.mxu0 0.0
    %834 = vmatpush1.msra.mxu0 0.0
    %835 = vmatprep.subr.mxu0 0.0
    %836 = vmatpush1.msra.mxu0 0.0
    %837 = vmatprep.subr.mxu0 0.0
    %838 = vmatpush1.msra.mxu0 0.0
    %839 = vmatprep.subr.mxu0 0.0
    %840 = vmatpush1.msra.mxu0 0.0
    %841 = vmatprep.subr.mxu0 0.0
    %842 = vmatpush1.msra.mxu0 0.0
    %843 = vmatprep.subr.mxu0 0.0
    %844 = vmatpush1.msra.mxu0 0.0
    %845 = vmatprep.subr.mxu0 0.0
    %846 = vmatpush1.msra.mxu0 0.0
    %847 = vmatprep.subr.mxu0 0.0
    %848 = vmatpush1.msra.mxu0 0.0
    %849 = vmatprep.subr.mxu0 0.0
    %850 = vmatpush1.msra.mxu0 0.0
    %851 = vmatprep.mubr.f32.mxu0 0.0
    %852 = vmatmul.mubr.f32.gmra.mrb[0].mxu0 %v785
    %v853 = vpop.f32.mrb[0].mxu0
    %v854 = vadd.f32 %v782, %v853
    %v855 = vpop.f32.mrb[0].mxu0
    %856 = vdwg.mxu0
    %v857 = vxor.u32 %v854, 2147483648
    %v858 = vmul.f32 %v857, 1.442695
    %v859 = vpow.pop %v858
    %v860 = vadd.f32 %v859, 1.0
    %v861 = vrcp.pop %v860
    %v862 = vmul.f32 1.0, %v861
    %vm863 = vcmask 91168
    %v864 = vsel %vm863, %v854, -inf
    %865 = vmax.xlane.f32.xlu0 %v864
    %v866 = vpop.xlane.xlu0 %865
    %v867 = vsub.f32 %v854, %v866
    %v868 = vmul.f32 %v867, 1.442695
    %v869 = vpow.pop %v868
    %871 = vrot.lane.b32.xlu0 %v869, 124
    %v872 = vpop.permute.xlu0 %871
    %vm874 = vcmask 58368
    %v875 = vsel %vm874, %v872, 0.0
    %876 = vadd.xlane.f32.xlu0 %v875
    %v877 = vpop.xlane.xlu0 %876
    %v878 = vrcp.pop %v877
    %v879 = vmul.f32 %v869, %v878
    %vm880 = vcmask 7168
    %vm881 = vcmask 25600
    %882 = vst.msk [vmem:[#allocation9] sm:$0x3] %vm881, %v862
    %v883 = vld [vmem:[#allocation6 + $0x40] sm:$0xff]
    %v884 = vld [vmem:[#allocation6 + $0x48] sm:$0xff]
    %v885 = vld [vmem:[#allocation6 + $0x50] sm:$0xff]
    %v886 = vld [vmem:[#allocation6 + $0x58] sm:$0xff]
    %v887 = vld [vmem:[#allocation6 + $0x60] sm:$0xff]
    %v888 = vld [vmem:[#allocation6 + $0x68] sm:$0xff]
    %v889 = vld [vmem:[#allocation6 + $0x70] sm:$0xff]
    %v890 = vld [vmem:[#allocation6 + $0x78] sm:$0xff]
    %v891 = vld [vmem:[#allocation6 + $0x80] sm:$0x1]
    %v892 = vld [vmem:[#allocation6 + $0x81] sm:$0x1]
    %v893 = vld [vmem:[#allocation6 + $0x82] sm:$0x1]
    %v894 = vld [vmem:[#allocation6 + $0x83] sm:$0x1]
    %v895 = vld [vmem:[#allocation6 + $0x84] sm:$0x1]
    %v896 = vld [vmem:[#allocation3] sm:$0x1]
    %v897 = vld [vmem:[#allocation3 + $0x1] sm:$0x1]
    %v899 = vrot.slane %v896, 7
    %900 = vrot.lane.b32.xlu0 %v899, 96
    %v901 = vpop.permute.xlu0 %900
    %v903 = vrot.slane %v896, 6
    %904 = vrot.lane.b32.xlu0 %v903, 64
    %v905 = vpop.permute.xlu0 %904
    %v908 = vrot.slane %v897, 5
    %v910 = vrot.slane %v897, 4
    %911 = vrot.lane.b32.xlu0 %v910, 96
    %v912 = vpop.permute.xlu0 %911
    %v914 = vrot.slane %v897, 3
    %915 = vrot.lane.b32.xlu0 %v914, 64
    %v916 = vpop.permute.xlu0 %915
    %vm918 = vcmask 1040384
    %v919 = vsel %vm918, %v896, %v901
    %vm920 = vcmask 1041408
    %v921 = vsel %vm920, %v919, %v905
    %vm922 = vcmask 1042432
    %v923 = vsel %vm922, %v921, %v908
    %vm924 = vcmask 1043456
    %v925 = vsel %vm924, %v923, %v912
    %vm926 = vcmask 1044480
    %v927 = vsel %vm926, %v925, %v916
    %v928 = vlaneseq
    %v929 = vshrl.u32 %v928, 7
    %v930 = vsub.s32 0, %v929
    %v931 = vrot.slane %v891, %v930
    %vm932 = vcmask 523264
    %v934 = vsel %vm932, %v927, 0
    %936 = vmatprep.subr.mxu0 0.0
    %937 = vmatpush1.msra.mxu0 %v883
    %938 = vmatprep.subr.mxu0 0.0
    %939 = vmatpush1.msra.mxu0 %v884
    %940 = vmatprep.subr.mxu0 0.0
    %941 = vmatpush1.msra.mxu0 %v885
    %942 = vmatprep.subr.mxu0 0.0
    %943 = vmatpush1.msra.mxu0 %v886
    %944 = vmatprep.subr.mxu0 0.0
    %945 = vmatpush1.msra.mxu0 %v887
    %946 = vmatprep.subr.mxu0 0.0
    %947 = vmatpush1.msra.mxu0 %v888
    %948 = vmatprep.subr.mxu0 0.0
    %949 = vmatpush1.msra.mxu0 %v889
    %950 = vmatprep.subr.mxu0 0.0
    %951 = vmatpush1.msra.mxu0 %v890
    %952 = vmatprep.subr.mxu0 0.0
    %953 = vmatpush1.msra.mxu0 0.0
    %954 = vmatprep.subr.mxu0 0.0
    %955 = vmatpush1.msra.mxu0 0.0
    %956 = vmatprep.subr.mxu0 0.0
    %957 = vmatpush1.msra.mxu0 0.0
    %958 = vmatprep.subr.mxu0 0.0
    %959 = vmatpush1.msra.mxu0 0.0
    %960 = vmatprep.subr.mxu0 0.0
    %961 = vmatpush1.msra.mxu0 0.0
    %962 = vmatprep.subr.mxu0 0.0
    %963 = vmatpush1.msra.mxu0 0.0
    %964 = vmatprep.subr.mxu0 0.0
    %965 = vmatpush1.msra.mxu0 0.0
    %966 = vmatprep.subr.mxu0 0.0
    %967 = vmatpush1.msra.mxu0 0.0
    %968 = vmatprep.subr.mxu0 0.0
    %969 = vmatpush1.msra.mxu0 0.0
    %970 = vmatprep.subr.mxu0 0.0
    %971 = vmatpush1.msra.mxu0 0.0
    %972 = vmatprep.subr.mxu0 0.0
    %973 = vmatpush1.msra.mxu0 0.0
    %974 = vmatprep.subr.mxu0 0.0
    %975 = vmatpush1.msra.mxu0 0.0
    %976 = vmatprep.subr.mxu0 0.0
    %977 = vmatpush1.msra.mxu0 0.0
    %978 = vmatprep.subr.mxu0 0.0
    %979 = vmatpush1.msra.mxu0 0.0
    %980 = vmatprep.subr.mxu0 0.0
    %981 = vmatpush1.msra.mxu0 0.0
    %982 = vmatprep.subr.mxu0 0.0
    %983 = vmatpush1.msra.mxu0 0.0
    %984 = vmatprep.subr.mxu0 0.0
    %985 = vmatpush1.msra.mxu0 0.0
    %986 = vmatprep.subr.mxu0 0.0
    %987 = vmatpush1.msra.mxu0 0.0
    %988 = vmatprep.subr.mxu0 0.0
    %989 = vmatpush1.msra.mxu0 0.0
    %990 = vmatprep.subr.mxu0 0.0
    %991 = vmatpush1.msra.mxu0 0.0
    %992 = vmatprep.subr.mxu0 0.0
    %993 = vmatpush1.msra.mxu0 0.0
    %994 = vmatprep.subr.mxu0 0.0
    %995 = vmatpush1.msra.mxu0 0.0
    %996 = vmatprep.subr.mxu0 0.0
    %997 = vmatpush1.msra.mxu0 0.0
    %998 = vmatprep.subr.mxu0 0.0
    %999 = vmatpush1.msra.mxu0 0.0
    %1000 = vmatprep.mubr.f32.mxu0 0.0
    %1001 = vmatmul.mubr.f32.gmra.mrb[0].mxu0 %v934
    %v1002 = vpop.f32.mrb[0].mxu0
    %v1003 = vadd.f32 %v931, %v1002
    %v1004 = vpop.f32.mrb[0].mxu0
    %1005 = vdwg.mxu0
    %vm1006 = vcmask 62464
    %v1007 = vsel %vm1006, %v1003, 0.0
    %v1008 = vrot.slane %v1007, 4
    %v1009 = vadd.f32 %v1007, %v1008
    %v1010 = vrot.slane %v1009, 2
    %v1011 = vadd.f32 %v1009, %v1010
    %v1012 = vrot.slane %v1011, 1
    %v1013 = vadd.f32 %v1011, %v1012
    %v1014 = vmul.f32 %v1013, 0.16666667
    %v1015 = vsub.f32 %v1003, %v1014
    %v1016 = vmul.f32 %v1015, %v1015
    %v1017 = vsel %vm1006, %v1016, 0.0
    %v1018 = vrot.slane %v1017, 4
    %v1019 = vadd.f32 %v1017, %v1018
    %v1020 = vrot.slane %v1019, 2
    %v1021 = vadd.f32 %v1019, %v1020
    %v1022 = vrot.slane %v1021, 1
    %v1023 = vadd.f32 %v1021, %v1022
    %v1024 = vmul.f32 %v1023, 0.16666667
    %v1025 = vadd.f32 %v1024, 1e-05
    %v1026 = vrsqrt.pop %v1025
    %v1027 = vmul.f32 %v1026, %v892
    %v1028 = vlaneseq
    %v1029 = vshrl.u32 %v1028, 7
    %v1030 = vsub.s32 0, %v1029
    %v1031 = vrot.slane %v1027, %v1030
    %v1032 = vmul.f32 %v1015, %v1031
    %v1033 = vlaneseq
    %v1034 = vshrl.u32 %v1033, 7
    %v1035 = vsub.s32 0, %v1034
    %v1036 = vrot.slane %v893, %v1035
    %v1037 = vadd.f32 %v1032, %v1036
    %v1038 = vmax.f32 %v1037, 0.0
    %v1039 = vlaneseq
    %v1040 = vshrl.u32 %v1039, 7
    %v1041 = vsub.s32 0, %v1040
    %v1042 = vrot.slane %v894, %v1041
    %v1043 = vmul.f32 %v1038, %v1042
    %v1044 = vsel %vm1006, %v1043, 0.0
    %1045 = vadd.xlane.f32.xlu0 %v1044
    %v1046 = vpop.xlane.xlu0 %1045
    %v1047 = vlaneseq
    %v1048 = vshrl.u32 %v1047, 7
    %v1049 = vsub.s32 0, %v1048
    %v1050 = vrot.slane %v895, %v1049
    %v1051 = vadd.f32 %v1046, %v1050
    %v1052 = vxor.u32 %v1051, 2147483648
    %v1053 = vmul.f32 %v1052, 1.442695
    %v1054 = vpow.pop %v1053
    %v1055 = vadd.f32 %v1054, 1.0
    %v1056 = vrcp.pop %v1055
    %v1057 = vmul.f32 1.0, %v1056
    %v1058 = vld [vmem:[#allocation6 + $0x90] sm:$0x3]
    %v1059 = vld [vmem:[#allocation6 + $0x98] sm:$0x3f]
    %1061 = vset.pattern.permute.xlu0 0
    %1062 = vperm.xlu0 %1061, %v1057
    %v1063 = vpop.permute.xlu0 %1062
    %v1065 = vmul.f32 %v1063, %v1059
    %vm1066 = vcmask 48128
    %v1068 = vsel %vm1066, %v1058, 0
    %vm1070 = vcmask 1045504
    %v1072 = vsel %vm1070, %v1065, 0
    %1074 = vmatprep.subr.mxu0 0.0
    %1075 = vmatpush1.msra.mxu0 %v1072
    %1076 = vmatprep.subr.mxu0 0.0
    %1077 = vmatpush1.msra.mxu0 0.0
    %1078 = vmatprep.subr.mxu0 0.0
    %1079 = vmatpush1.msra.mxu0 0.0
    %1080 = vmatprep.subr.mxu0 0.0
    %1081 = vmatpush1.msra.mxu0 0.0
    %1082 = vmatprep.subr.mxu0 0.0
    %1083 = vmatpush1.msra.mxu0 0.0
    %1084 = vmatprep.subr.mxu0 0.0
    %1085 = vmatpush1.msra.mxu0 0.0
    %1086 = vmatprep.subr.mxu0 0.0
    %1087 = vmatpush1.msra.mxu0 0.0
    %1088 = vmatprep.subr.mxu0 0.0
    %1089 = vmatpush1.msra.mxu0 0.0
    %1090 = vmatprep.subr.mxu0 0.0
    %1091 = vmatpush1.msra.mxu0 0.0
    %1092 = vmatprep.subr.mxu0 0.0
    %1093 = vmatpush1.msra.mxu0 0.0
    %1094 = vmatprep.subr.mxu0 0.0
    %1095 = vmatpush1.msra.mxu0 0.0
    %1096 = vmatprep.subr.mxu0 0.0
    %1097 = vmatpush1.msra.mxu0 0.0
    %1098 = vmatprep.subr.mxu0 0.0
    %1099 = vmatpush1.msra.mxu0 0.0
    %1100 = vmatprep.subr.mxu0 0.0
    %1101 = vmatpush1.msra.mxu0 0.0
    %1102 = vmatprep.subr.mxu0 0.0
    %1103 = vmatpush1.msra.mxu0 0.0
    %1104 = vmatprep.subr.mxu0 0.0
    %1105 = vmatpush1.msra.mxu0 0.0
    %1106 = vmatprep.subr.mxu0 0.0
    %1107 = vmatpush1.msra.mxu0 0.0
    %1108 = vmatprep.subr.mxu0 0.0
    %1109 = vmatpush1.msra.mxu0 0.0
    %1110 = vmatprep.subr.mxu0 0.0
    %1111 = vmatpush1.msra.mxu0 0.0
    %1112 = vmatprep.subr.mxu0 0.0
    %1113 = vmatpush1.msra.mxu0 0.0
    %1114 = vmatprep.subr.mxu0 0.0
    %1115 = vmatpush1.msra.mxu0 0.0
    %1116 = vmatprep.subr.mxu0 0.0
    %1117 = vmatpush1.msra.mxu0 0.0
    %1118 = vmatprep.subr.mxu0 0.0
    %1119 = vmatpush1.msra.mxu0 0.0
    %1120 = vmatprep.subr.mxu0 0.0
    %1121 = vmatpush1.msra.mxu0 0.0
    %1122 = vmatprep.subr.mxu0 0.0
    %1123 = vmatpush1.msra.mxu0 0.0
    %1124 = vmatprep.subr.mxu0 0.0
    %1125 = vmatpush1.msra.mxu0 0.0
    %1126 = vmatprep.subr.mxu0 0.0
    %1127 = vmatpush1.msra.mxu0 0.0
    %1128 = vmatprep.subr.mxu0 0.0
    %1129 = vmatpush1.msra.mxu0 0.0
    %1130 = vmatprep.subr.mxu0 0.0
    %1131 = vmatpush1.msra.mxu0 0.0
    %1132 = vmatprep.subr.mxu0 0.0
    %1133 = vmatpush1.msra.mxu0 0.0
    %1134 = vmatprep.subr.mxu0 0.0
    %1135 = vmatpush1.msra.mxu0 0.0
    %1136 = vmatprep.subr.mxu0 0.0
    %1137 = vmatpush1.msra.mxu0 0.0
    %1138 = vmatprep.mubr.f32.mxu0 0.0
    %1139 = vmatmul.mubr.f32.gmra.mrb[0].mxu0 %v1068
    %v1140 = vpop.f32.mrb[0].mxu0
    %v1141 = vadd.f32 0.0, %v1140
    %v1142 = vpop.f32.mrb[0].mxu0
    %1143 = vdwg.mxu0
    %v1144 = vld [vmem:[#allocation6 + $0x88] sm:$0xff]
    %1146 = vrot.lane.b32.xlu0 %v879, 124
    %v1147 = vpop.permute.xlu0 %1146
    %vm1148 = vcmask 64512
    %v1149 = vsel %vm1148, %v1147, 0
    %1151 = vmatprep.subr.mxu0 0.0
    %1152 = vmatpush1.msra.mxu0 %v1144
    %1153 = vmatprep.subr.mxu0 0.0
    %1154 = vmatpush1.msra.mxu0 0.0
    %1155 = vmatprep.subr.mxu0 0.0
    %1156 = vmatpush1.msra.mxu0 0.0
    %1157 = vmatprep.subr.mxu0 0.0
    %1158 = vmatpush1.msra.mxu0 0.0
    %1159 = vmatprep.subr.mxu0 0.0
    %1160 = vmatpush1.msra.mxu0 0.0
    %1161 = vmatprep.subr.mxu0 0.0
    %1162 = vmatpush1.msra.mxu0 0.0
    %1163 = vmatprep.subr.mxu0 0.0
    %1164 = vmatpush1.msra.mxu0 0.0
    %1165 = vmatprep.subr.mxu0 0.0
    %1166 = vmatpush1.msra.mxu0 0.0
    %1167 = vmatprep.subr.mxu0 0.0
    %1168 = vmatpush1.msra.mxu0 0.0
    %1169 = vmatprep.subr.mxu0 0.0
    %1170 = vmatpush1.msra.mxu0 0.0
    %1171 = vmatprep.subr.mxu0 0.0
    %1172 = vmatpush1.msra.mxu0 0.0
    %1173 = vmatprep.subr.mxu0 0.0
    %1174 = vmatpush1.msra.mxu0 0.0
    %1175 = vmatprep.subr.mxu0 0.0
    %1176 = vmatpush1.msra.mxu0 0.0
    %1177 = vmatprep.subr.mxu0 0.0
    %1178 = vmatpush1.msra.mxu0 0.0
    %1179 = vmatprep.subr.mxu0 0.0
    %1180 = vmatpush1.msra.mxu0 0.0
    %1181 = vmatprep.subr.mxu0 0.0
    %1182 = vmatpush1.msra.mxu0 0.0
    %1183 = vmatprep.subr.mxu0 0.0
    %1184 = vmatpush1.msra.mxu0 0.0
    %1185 = vmatprep.subr.mxu0 0.0
    %1186 = vmatpush1.msra.mxu0 0.0
    %1187 = vmatprep.subr.mxu0 0.0
    %1188 = vmatpush1.msra.mxu0 0.0
    %1189 = vmatprep.subr.mxu0 0.0
    %1190 = vmatpush1.msra.mxu0 0.0
    %1191 = vmatprep.subr.mxu0 0.0
    %1192 = vmatpush1.msra.mxu0 0.0
    %1193 = vmatprep.subr.mxu0 0.0
    %1194 = vmatpush1.msra.mxu0 0.0
    %1195 = vmatprep.subr.mxu0 0.0
    %1196 = vmatpush1.msra.mxu0 0.0
    %1197 = vmatprep.subr.mxu0 0.0
    %1198 = vmatpush1.msra.mxu0 0.0
    %1199 = vmatprep.subr.mxu0 0.0
    %1200 = vmatpush1.msra.mxu0 0.0
    %1201 = vmatprep.subr.mxu0 0.0
    %1202 = vmatpush1.msra.mxu0 0.0
    %1203 = vmatprep.subr.mxu0 0.0
    %1204 = vmatpush1.msra.mxu0 0.0
    %1205 = vmatprep.subr.mxu0 0.0
    %1206 = vmatpush1.msra.mxu0 0.0
    %1207 = vmatprep.subr.mxu0 0.0
    %1208 = vmatpush1.msra.mxu0 0.0
    %1209 = vmatprep.subr.mxu0 0.0
    %1210 = vmatpush1.msra.mxu0 0.0
    %1211 = vmatprep.subr.mxu0 0.0
    %1212 = vmatpush1.msra.mxu0 0.0
    %1213 = vmatprep.subr.mxu0 0.0
    %1214 = vmatpush1.msra.mxu0 0.0
    %1215 = vmatprep.mubr.f32.mxu0 0.0
    %1216 = vmatmul.mubr.f32.gmra.mrb[0].mxu0 %v1149
    %v1217 = vpop.f32.mrb[0].mxu0
    %v1218 = vadd.f32 0.0, %v1217
    %v1219 = vpop.f32.mrb[0].mxu0
    %1220 = vdwg.mxu0
    %v1221 = vld [vmem:[#allocation2] sm:$0xf]
    %1223 = vset.pattern.permute.xlu0 0
    %1224 = vperm.xlu0 %1223, %v1218
    %v1225 = vpop.permute.xlu0 %1224
    %v1229 = vunpack.c.l.s4 1983009808
    %v1230 = vunpack.c.0.s8 %v1229
    %v1231 = vlaneseq
    %v1232 = vshrl.u32 %v1231, 7
    %v1233 = vsub.s32 %v1230, %v1232
    %v1234 = vrot.slane %v1221, %v1233
    %v1235 = vcombine.high %v1234, %v1234
    %1236 = vrot.lane.b32.xlu0 %v1234, 15
    %v1237 = vpop.permute.xlu0 %1236
    %1238 = vrot.lane.b32.xlu0 %v1235, 15
    %v1239 = vpop.permute.xlu0 %1238
    %vm1240 = vcmask 121856
    %v1241 = vsel %vm1240, %v1237, %v1239
    %v1243 = vmul.f32 %v1225, %v1241
    %v1244 = vadd.f32 %v1243, 0.0
    %v1245 = vld [vmem:[#allocation2] sm:$0xf]
    %1246 = vset.pattern.permute.xlu0 1
    %1247 = vperm.xlu0 %1246, %v1218
    %v1248 = vpop.permute.xlu0 %1247
    %v1252 = vunpack.c.l.s4 1983009808
    %v1253 = vunpack.c.0.s8 %v1252
    %v1254 = vlaneseq
    %v1255 = vshrl.u32 %v1254, 7
    %v1256 = vsub.s32 %v1253, %v1255
    %v1257 = vrot.slane %v1245, %v1256
    %v1258 = vcombine.high %v1257, %v1257
    %1259 = vrot.lane.b32.xlu0 %v1257, 14
    %v1260 = vpop.permute.xlu0 %1259
    %1261 = vrot.lane.b32.xlu0 %v1258, 14
    %v1262 = vpop.permute.xlu0 %1261
    %vm1263 = vcmask 113664
    %v1264 = vsel %vm1263, %v1260, %v1262
    %v1266 = vmul.f32 %v1248, %v1264
    %v1267 = vadd.f32 %v1244, %v1266
    %v1268 = vld [vmem:[#allocation2] sm:$0xf]
    %1269 = vset.pattern.permute.xlu0 2
    %1270 = vperm.xlu0 %1269, %v1218
    %v1271 = vpop.permute.xlu0 %1270
    %v1275 = vunpack.c.l.s4 1983009808
    %v1276 = vunpack.c.0.s8 %v1275
    %v1277 = vlaneseq
    %v1278 = vshrl.u32 %v1277, 7
    %v1279 = vsub.s32 %v1276, %v1278
    %v1280 = vrot.slane %v1268, %v1279
    %v1281 = vcombine.high %v1280, %v1280
    %1282 = vrot.lane.b32.xlu0 %v1280, 13
    %v1283 = vpop.permute.xlu0 %1282
    %1284 = vrot.lane.b32.xlu0 %v1281, 13
    %v1285 = vpop.permute.xlu0 %1284
    %vm1286 = vcmask 105472
    %v1287 = vsel %vm1286, %v1283, %v1285
    %v1289 = vmul.f32 %v1271, %v1287
    %v1290 = vadd.f32 %v1267, %v1289
    %v1291 = vld [vmem:[#allocation2] sm:$0xf]
    %1292 = vset.pattern.permute.xlu0 3
    %1293 = vperm.xlu0 %1292, %v1218
    %v1294 = vpop.permute.xlu0 %1293
    %v1298 = vunpack.c.l.s4 1983009808
    %v1299 = vunpack.c.0.s8 %v1298
    %v1300 = vlaneseq
    %v1301 = vshrl.u32 %v1300, 7
    %v1302 = vsub.s32 %v1299, %v1301
    %v1303 = vrot.slane %v1291, %v1302
    %v1304 = vcombine.high %v1303, %v1303
    %1305 = vrot.lane.b32.xlu0 %v1303, 12
    %v1306 = vpop.permute.xlu0 %1305
    %1307 = vrot.lane.b32.xlu0 %v1304, 12
    %v1308 = vpop.permute.xlu0 %1307
    %vm1309 = vcmask 97280
    %v1310 = vsel %vm1309, %v1306, %v1308
    %v1312 = vmul.f32 %v1294, %v1310
    %v1313 = vadd.f32 %v1290, %v1312
    %v1314 = vld [vmem:[#allocation2] sm:$0xf]
    %1315 = vset.pattern.permute.xlu0 4
    %1316 = vperm.xlu0 %1315, %v1218
    %v1317 = vpop.permute.xlu0 %1316
    %v1321 = vunpack.c.l.s4 1983009808
    %v1322 = vunpack.c.0.s8 %v1321
    %v1323 = vlaneseq
    %v1324 = vshrl.u32 %v1323, 7
    %v1325 = vsub.s32 %v1322, %v1324
    %v1326 = vrot.slane %v1314, %v1325
    %v1327 = vcombine.high %v1326, %v1326
    %1328 = vrot.lane.b32.xlu0 %v1326, 11
    %v1329 = vpop.permute.xlu0 %1328
    %1330 = vrot.lane.b32.xlu0 %v1327, 11
    %v1331 = vpop.permute.xlu0 %1330
    %vm1332 = vcmask 89088
    %v1333 = vsel %vm1332, %v1329, %v1331
    %v1335 = vmul.f32 %v1317, %v1333
    %v1336 = vadd.f32 %v1313, %v1335
    %v1337 = vld [vmem:[#allocation2] sm:$0xf]
    %1338 = vset.pattern.permute.xlu0 5
    %1339 = vperm.xlu0 %1338, %v1218
    %v1340 = vpop.permute.xlu0 %1339
    %v1344 = vunpack.c.l.s4 1983009808
    %v1345 = vunpack.c.0.s8 %v1344
    %v1346 = vlaneseq
    %v1347 = vshrl.u32 %v1346, 7
    %v1348 = vsub.s32 %v1345, %v1347
    %v1349 = vrot.slane %v1337, %v1348
    %v1350 = vcombine.high %v1349, %v1349
    %1351 = vrot.lane.b32.xlu0 %v1349, 10
    %v1352 = vpop.permute.xlu0 %1351
    %1353 = vrot.lane.b32.xlu0 %v1350, 10
    %v1354 = vpop.permute.xlu0 %1353
    %vm1355 = vcmask 80896
    %v1356 = vsel %vm1355, %v1352, %v1354
    %v1358 = vmul.f32 %v1340, %v1356
    %v1359 = vadd.f32 %v1336, %v1358
    %v1360 = vld [vmem:[#allocation2] sm:$0xf]
    %1361 = vset.pattern.permute.xlu0 6
    %1362 = vperm.xlu0 %1361, %v1218
    %v1363 = vpop.permute.xlu0 %1362
    %v1367 = vunpack.c.l.s4 1983009808
    %v1368 = vunpack.c.0.s8 %v1367
    %v1369 = vlaneseq
    %v1370 = vshrl.u32 %v1369, 7
    %v1371 = vsub.s32 %v1368, %v1370
    %v1372 = vrot.slane %v1360, %v1371
    %v1373 = vcombine.high %v1372, %v1372
    %1374 = vrot.lane.b32.xlu0 %v1372, 9
    %v1375 = vpop.permute.xlu0 %1374
    %1376 = vrot.lane.b32.xlu0 %v1373, 9
    %v1377 = vpop.permute.xlu0 %1376
    %vm1378 = vcmask 72704
    %v1379 = vsel %vm1378, %v1375, %v1377
    %v1381 = vmul.f32 %v1363, %v1379
    %v1382 = vadd.f32 %v1359, %v1381
    %v1383 = vld [vmem:[#allocation2] sm:$0xf]
    %1384 = vset.pattern.permute.xlu0 7
    %1385 = vperm.xlu0 %1384, %v1218
    %v1386 = vpop.permute.xlu0 %1385
    %v1390 = vunpack.c.l.s4 1983009808
    %v1391 = vunpack.c.0.s8 %v1390
    %v1392 = vlaneseq
    %v1393 = vshrl.u32 %v1392, 7
    %v1394 = vsub.s32 %v1391, %v1393
    %v1395 = vrot.slane %v1383, %v1394
    %v1396 = vcombine.high %v1395, %v1395
    %1397 = vrot.lane.b32.xlu0 %v1395, 8
    %v1398 = vpop.permute.xlu0 %1397
    %1399 = vrot.lane.b32.xlu0 %v1396, 8
    %v1400 = vpop.permute.xlu0 %1399
    %v1401 = vsel %vm1148, %v1398, %v1400
    %v1403 = vmul.f32 %v1386, %v1401
    %v1404 = vadd.f32 %v1382, %v1403
    %v1405 = vld [vmem:[#allocation2] sm:$0xf]
    %1406 = vset.pattern.permute.xlu0 8
    %1407 = vperm.xlu0 %1406, %v1218
    %v1408 = vpop.permute.xlu0 %1407
    %v1412 = vunpack.c.l.s4 1983009808
    %v1413 = vunpack.c.0.s8 %v1412
    %v1414 = vlaneseq
    %v1415 = vshrl.u32 %v1414, 7
    %v1416 = vsub.s32 %v1413, %v1415
    %v1417 = vrot.slane %v1405, %v1416
    %v1418 = vcombine.high %v1417, %v1417
    %1419 = vrot.lane.b32.xlu0 %v1417, 7
    %v1420 = vpop.permute.xlu0 %1419
    %1421 = vrot.lane.b32.xlu0 %v1418, 7
    %v1422 = vpop.permute.xlu0 %1421
    %v1423 = vsel %vm586, %v1420, %v1422
    %v1425 = vmul.f32 %v1408, %v1423
    %v1426 = vadd.f32 %v1404, %v1425
    %v1427 = vld [vmem:[#allocation2] sm:$0xf]
    %1428 = vset.pattern.permute.xlu0 9
    %1429 = vperm.xlu0 %1428, %v1218
    %v1430 = vpop.permute.xlu0 %1429
    %v1434 = vunpack.c.l.s4 1983009808
    %v1435 = vunpack.c.0.s8 %v1434
    %v1436 = vlaneseq
    %v1437 = vshrl.u32 %v1436, 7
    %v1438 = vsub.s32 %v1435, %v1437
    %v1439 = vrot.slane %v1427, %v1438
    %v1440 = vcombine.high %v1439, %v1439
    %1441 = vrot.lane.b32.xlu0 %v1439, 6
    %v1442 = vpop.permute.xlu0 %1441
    %1443 = vrot.lane.b32.xlu0 %v1440, 6
    %v1444 = vpop.permute.xlu0 %1443
    %v1445 = vsel %vm1066, %v1442, %v1444
    %v1447 = vmul.f32 %v1430, %v1445
    %v1448 = vadd.f32 %v1426, %v1447
    %v1449 = vld [vmem:[#allocation2] sm:$0xf]
    %1450 = vset.pattern.permute.xlu0 10
    %1451 = vperm.xlu0 %1450, %v1218
    %v1452 = vpop.permute.xlu0 %1451
    %v1456 = vunpack.c.l.s4 1983009808
    %v1457 = vunpack.c.0.s8 %v1456
    %v1458 = vlaneseq
    %v1459 = vshrl.u32 %v1458, 7
    %v1460 = vsub.s32 %v1457, %v1459
    %v1461 = vrot.slane %v1449, %v1460
    %v1462 = vcombine.high %v1461, %v1461
    %1463 = vrot.lane.b32.xlu0 %v1461, 5
    %v1464 = vpop.permute.xlu0 %1463
    %1465 = vrot.lane.b32.xlu0 %v1462, 5
    %v1466 = vpop.permute.xlu0 %1465
    %vm1467 = vcmask 39936
    %v1468 = vsel %vm1467, %v1464, %v1466
    %v1470 = vmul.f32 %v1452, %v1468
    %v1471 = vadd.f32 %v1448, %v1470
    %v1472 = vld [vmem:[#allocation2] sm:$0xf]
    %1473 = vset.pattern.permute.xlu0 11
    %1474 = vperm.xlu0 %1473, %v1218
    %v1475 = vpop.permute.xlu0 %1474
    %v1479 = vunpack.c.l.s4 1983009808
    %v1480 = vunpack.c.0.s8 %v1479
    %v1481 = vlaneseq
    %v1482 = vshrl.u32 %v1481, 7
    %v1483 = vsub.s32 %v1480, %v1482
    %v1484 = vrot.slane %v1472, %v1483
    %v1485 = vcombine.high %v1484, %v1484
    %1486 = vrot.lane.b32.xlu0 %v1484, 4
    %v1487 = vpop.permute.xlu0 %1486
    %1488 = vrot.lane.b32.xlu0 %v1485, 4
    %v1489 = vpop.permute.xlu0 %1488
    %vm1490 = vcmask 31744
    %v1491 = vsel %vm1490, %v1487, %v1489
    %v1493 = vmul.f32 %v1475, %v1491
    %v1494 = vadd.f32 %v1471, %v1493
    %v1495 = vld [vmem:[#allocation2] sm:$0xf]
    %1496 = vset.pattern.permute.xlu0 12
    %1497 = vperm.xlu0 %1496, %v1218
    %v1498 = vpop.permute.xlu0 %1497
    %v1502 = vunpack.c.l.s4 1983009808
    %v1503 = vunpack.c.0.s8 %v1502
    %v1504 = vlaneseq
    %v1505 = vshrl.u32 %v1504, 7
    %v1506 = vsub.s32 %v1503, %v1505
    %v1507 = vrot.slane %v1495, %v1506
    %v1508 = vcombine.high %v1507, %v1507
    %1509 = vrot.lane.b32.xlu0 %v1507, 3
    %v1510 = vpop.permute.xlu0 %1509
    %1511 = vrot.lane.b32.xlu0 %v1508, 3
    %v1512 = vpop.permute.xlu0 %1511
    %vm1513 = vcmask 23552
    %v1514 = vsel %vm1513, %v1510, %v1512
    %v1516 = vmul.f32 %v1498, %v1514
    %v1517 = vadd.f32 %v1494, %v1516
    %v1518 = vld [vmem:[#allocation2] sm:$0xf]
    %1519 = vset.pattern.permute.xlu0 13
    %1520 = vperm.xlu0 %1519, %v1218
    %v1521 = vpop.permute.xlu0 %1520
    %v1525 = vunpack.c.l.s4 1983009808
    %v1526 = vunpack.c.0.s8 %v1525
    %v1527 = vlaneseq
    %v1528 = vshrl.u32 %v1527, 7
    %v1529 = vsub.s32 %v1526, %v1528
    %v1530 = vrot.slane %v1518, %v1529
    %v1531 = vcombine.high %v1530, %v1530
    %1532 = vrot.lane.b32.xlu0 %v1530, 2
    %v1533 = vpop.permute.xlu0 %1532
    %1534 = vrot.lane.b32.xlu0 %v1531, 2
    %v1535 = vpop.permute.xlu0 %1534
    %vm1536 = vcmask 15360
    %v1537 = vsel %vm1536, %v1533, %v1535
    %v1539 = vmul.f32 %v1521, %v1537
    %v1540 = vadd.f32 %v1517, %v1539
    %v1541 = vld [vmem:[#allocation2] sm:$0xf]
    %1542 = vset.pattern.permute.xlu0 14
    %1543 = vperm.xlu0 %1542, %v1218
    %v1544 = vpop.permute.xlu0 %1543
    %v1548 = vunpack.c.l.s4 1983009808
    %v1549 = vunpack.c.0.s8 %v1548
    %v1550 = vlaneseq
    %v1551 = vshrl.u32 %v1550, 7
    %v1552 = vsub.s32 %v1549, %v1551
    %v1553 = vrot.slane %v1541, %v1552
    %v1554 = vcombine.high %v1553, %v1553
    %1555 = vrot.lane.b32.xlu0 %v1553, 1
    %v1556 = vpop.permute.xlu0 %1555
    %1557 = vrot.lane.b32.xlu0 %v1554, 1
    %v1558 = vpop.permute.xlu0 %1557
    %v1559 = vsel %vm880, %v1556, %v1558
    %v1561 = vmul.f32 %v1544, %v1559
    %v1562 = vadd.f32 %v1540, %v1561
    %v1563 = vld [vmem:[#allocation2 + $0x2] sm:$0x3]
    %1564 = vset.pattern.permute.xlu0 15
    %1565 = vperm.xlu0 %1564, %v1218
    %v1566 = vpop.permute.xlu0 %1565
    %v1568 = vmul.f32 %v1566, %v1563
    %v1569 = vadd.f32 %v1562, %v1568
    %v1570 = vld [vmem:[#allocation2 + $0x2] sm:$0xf]
    %1571 = vset.pattern.permute.xlu0 16
    %1572 = vperm.xlu0 %1571, %v1218
    %v1573 = vpop.permute.xlu0 %1572
    %v1577 = vunpack.c.l.s4 1983009808
    %v1578 = vunpack.c.0.s8 %v1577
    %v1579 = vlaneseq
    %v1580 = vshrl.u32 %v1579, 7
    %v1581 = vsub.s32 %v1578, %v1580
    %v1582 = vrot.slane %v1570, %v1581
    %v1583 = vcombine.high %v1582, %v1582
    %1584 = vrot.lane.b32.xlu0 %v1582, 127
    %v1585 = vpop.permute.xlu0 %1584
    %1586 = vrot.lane.b32.xlu0 %v1583, 127
    %v1587 = vpop.permute.xlu0 %1586
    %v1588 = vsel %vm89, %v1585, %v1587
    %v1590 = vmul.f32 %v1573, %v1588
    %v1591 = vadd.f32 %v1569, %v1590
    %v1592 = vld [vmem:[#allocation2 + $0x2] sm:$0xf]
    %1593 = vset.pattern.permute.xlu0 17
    %1594 = vperm.xlu0 %1593, %v1218
    %v1595 = vpop.permute.xlu0 %1594
    %v1599 = vunpack.c.l.s4 1983009808
    %v1600 = vunpack.c.0.s8 %v1599
    %v1601 = vlaneseq
    %v1602 = vshrl.u32 %v1601, 7
    %v1603 = vsub.s32 %v1600, %v1602
    %v1604 = vrot.slane %v1592, %v1603
    %v1605 = vcombine.high %v1604, %v1604
    %1606 = vrot.lane.b32.xlu0 %v1604, 126
    %v1607 = vpop.permute.xlu0 %1606
    %1608 = vrot.lane.b32.xlu0 %v1605, 126
    %v1609 = vpop.permute.xlu0 %1608
    %v1610 = vsel %vm107, %v1607, %v1609
    %v1612 = vmul.f32 %v1595, %v1610
    %v1613 = vadd.f32 %v1591, %v1612
    %v1614 = vld [vmem:[#allocation2 + $0x2] sm:$0xf]
    %1615 = vset.pattern.permute.xlu0 18
    %1616 = vperm.xlu0 %1615, %v1218
    %v1617 = vpop.permute.xlu0 %1616
    %v1621 = vunpack.c.l.s4 1983009808
    %v1622 = vunpack.c.0.s8 %v1621
    %v1623 = vlaneseq
    %v1624 = vshrl.u32 %v1623, 7
    %v1625 = vsub.s32 %v1622, %v1624
    %v1626 = vrot.slane %v1614, %v1625
    %v1627 = vcombine.high %v1626, %v1626
    %1628 = vrot.lane.b32.xlu0 %v1626, 125
    %v1629 = vpop.permute.xlu0 %1628
    %1630 = vrot.lane.b32.xlu0 %v1627, 125
    %v1631 = vpop.permute.xlu0 %1630
    %v1632 = vsel %vm125, %v1629, %v1631
    %v1634 = vmul.f32 %v1617, %v1632
    %v1635 = vadd.f32 %v1613, %v1634
    %v1636 = vld [vmem:[#allocation2 + $0x2] sm:$0xf]
    %1637 = vset.pattern.permute.xlu0 19
    %1638 = vperm.xlu0 %1637, %v1218
    %v1639 = vpop.permute.xlu0 %1638
    %v1643 = vunpack.c.l.s4 1983009808
    %v1644 = vunpack.c.0.s8 %v1643
    %v1645 = vlaneseq
    %v1646 = vshrl.u32 %v1645, 7
    %v1647 = vsub.s32 %v1644, %v1646
    %v1648 = vrot.slane %v1636, %v1647
    %v1649 = vcombine.high %v1648, %v1648
    %1650 = vrot.lane.b32.xlu0 %v1648, 124
    %v1651 = vpop.permute.xlu0 %1650
    %1652 = vrot.lane.b32.xlu0 %v1649, 124
    %v1653 = vpop.permute.xlu0 %1652
    %v1654 = vsel %vm143, %v1651, %v1653
    %v1656 = vmul.f32 %v1639, %v1654
    %v1657 = vadd.f32 %v1635, %v1656
    %v1658 = vld [vmem:[#allocation2 + $0x2] sm:$0xf]
    %1659 = vset.pattern.permute.xlu0 20
    %1660 = vperm.xlu0 %1659, %v1218
    %v1661 = vpop.permute.xlu0 %1660
    %v1665 = vunpack.c.l.s4 1983009808
    %v1666 = vunpack.c.0.s8 %v1665
    %v1667 = vlaneseq
    %v1668 = vshrl.u32 %v1667, 7
    %v1669 = vsub.s32 %v1666, %v1668
    %v1670 = vrot.slane %v1658, %v1669
    %v1671 = vcombine.high %v1670, %v1670
    %1672 = vrot.lane.b32.xlu0 %v1670, 123
    %v1673 = vpop.permute.xlu0 %1672
    %1674 = vrot.lane.b32.xlu0 %v1671, 123
    %v1675 = vpop.permute.xlu0 %1674
    %v1676 = vsel %vm161, %v1673, %v1675
    %v1678 = vmul.f32 %v1661, %v1676
    %v1679 = vadd.f32 %v1657, %v1678
    %v1680 = vld [vmem:[#allocation2 + $0x2] sm:$0xf]
    %1681 = vset.pattern.permute.xlu0 21
    %1682 = vperm.xlu0 %1681, %v1218
    %v1683 = vpop.permute.xlu0 %1682
    %v1687 = vunpack.c.l.s4 1983009808
    %v1688 = vunpack.c.0.s8 %v1687
    %v1689 = vlaneseq
    %v1690 = vshrl.u32 %v1689, 7
    %v1691 = vsub.s32 %v1688, %v1690
    %v1692 = vrot.slane %v1680, %v1691
    %v1693 = vcombine.high %v1692, %v1692
    %1694 = vrot.lane.b32.xlu0 %v1692, 122
    %v1695 = vpop.permute.xlu0 %1694
    %1696 = vrot.lane.b32.xlu0 %v1693, 122
    %v1697 = vpop.permute.xlu0 %1696
    %v1698 = vsel %vm179, %v1695, %v1697
    %v1700 = vmul.f32 %v1683, %v1698
    %v1701 = vadd.f32 %v1679, %v1700
    %v1702 = vld [vmem:[#allocation2 + $0x2] sm:$0xf]
    %1703 = vset.pattern.permute.xlu0 22
    %1704 = vperm.xlu0 %1703, %v1218
    %v1705 = vpop.permute.xlu0 %1704
    %v1709 = vunpack.c.l.s4 1983009808
    %v1710 = vunpack.c.0.s8 %v1709
    %v1711 = vlaneseq
    %v1712 = vshrl.u32 %v1711, 7
    %v1713 = vsub.s32 %v1710, %v1712
    %v1714 = vrot.slane %v1702, %v1713
    %v1715 = vcombine.high %v1714, %v1714
    %1716 = vrot.lane.b32.xlu0 %v1714, 121
    %v1717 = vpop.permute.xlu0 %1716
    %1718 = vrot.lane.b32.xlu0 %v1715, 121
    %v1719 = vpop.permute.xlu0 %1718
    %vm1720 = vcmask 990208
    %v1721 = vsel %vm1720, %v1717, %v1719
    %v1723 = vmul.f32 %v1705, %v1721
    %v1724 = vadd.f32 %v1701, %v1723
    %v1725 = vld [vmem:[#allocation2 + $0x2] sm:$0xf]
    %1726 = vset.pattern.permute.xlu0 23
    %1727 = vperm.xlu0 %1726, %v1218
    %v1728 = vpop.permute.xlu0 %1727
    %v1732 = vunpack.c.l.s4 1983009808
    %v1733 = vunpack.c.0.s8 %v1732
    %v1734 = vlaneseq
    %v1735 = vshrl.u32 %v1734, 7
    %v1736 = vsub.s32 %v1733, %v1735
    %v1737 = vrot.slane %v1725, %v1736
    %v1738 = vcombine.high %v1737, %v1737
    %1739 = vrot.lane.b32.xlu0 %v1737, 120
    %v1740 = vpop.permute.xlu0 %1739
    %1741 = vrot.lane.b32.xlu0 %v1738, 120
    %v1742 = vpop.permute.xlu0 %1741
    %v1743 = vsel %vm233, %v1740, %v1742
    %v1745 = vmul.f32 %v1728, %v1743
    %v1746 = vadd.f32 %v1724, %v1745
    %v1747 = vld [vmem:[#allocation2 + $0x2] sm:$0xf]
    %1748 = vset.pattern.permute.xlu0 24
    %1749 = vperm.xlu0 %1748, %v1218
    %v1750 = vpop.permute.xlu0 %1749
    %v1754 = vunpack.c.l.s4 1983009808
    %v1755 = vunpack.c.0.s8 %v1754
    %v1756 = vlaneseq
    %v1757 = vshrl.u32 %v1756, 7
    %v1758 = vsub.s32 %v1755, %v1757
    %v1759 = vrot.slane %v1747, %v1758
    %v1760 = vcombine.high %v1759, %v1759
    %1761 = vrot.lane.b32.xlu0 %v1759, 119
    %v1762 = vpop.permute.xlu0 %1761
    %1763 = vrot.lane.b32.xlu0 %v1760, 119
    %v1764 = vpop.permute.xlu0 %1763
    %v1765 = vsel %vm251, %v1762, %v1764
    %v1767 = vmul.f32 %v1750, %v1765
    %v1768 = vadd.f32 %v1746, %v1767
    %v1769 = vld [vmem:[#allocation2 + $0x2] sm:$0xf]
    %1770 = vset.pattern.permute.xlu0 25
    %1771 = vperm.xlu0 %1770, %v1218
    %v1772 = vpop.permute.xlu0 %1771
    %v1776 = vunpack.c.l.s4 1983009808
    %v1777 = vunpack.c.0.s8 %v1776
    %v1778 = vlaneseq
    %v1779 = vshrl.u32 %v1778, 7
    %v1780 = vsub.s32 %v1777, %v1779
    %v1781 = vrot.slane %v1769, %v1780
    %v1782 = vcombine.high %v1781, %v1781
    %1783 = vrot.lane.b32.xlu0 %v1781, 118
    %v1784 = vpop.permute.xlu0 %1783
    %1785 = vrot.lane.b32.xlu0 %v1782, 118
    %v1786 = vpop.permute.xlu0 %1785
    %v1787 = vsel %vm269, %v1784, %v1786
    %v1789 = vmul.f32 %v1772, %v1787
    %v1790 = vadd.f32 %v1768, %v1789
    %v1791 = vld [vmem:[#allocation2 + $0x2] sm:$0xf]
    %1792 = vset.pattern.permute.xlu0 26
    %1793 = vperm.xlu0 %1792, %v1218
    %v1794 = vpop.permute.xlu0 %1793
    %v1798 = vunpack.c.l.s4 1983009808
    %v1799 = vunpack.c.0.s8 %v1798
    %v1800 = vlaneseq
    %v1801 = vshrl.u32 %v1800, 7
    %v1802 = vsub.s32 %v1799, %v1801
    %v1803 = vrot.slane %v1791, %v1802
    %v1804 = vcombine.high %v1803, %v1803
    %1805 = vrot.lane.b32.xlu0 %v1803, 117
    %v1806 = vpop.permute.xlu0 %1805
    %1807 = vrot.lane.b32.xlu0 %v1804, 117
    %v1808 = vpop.permute.xlu0 %1807
    %v1809 = vsel %vm287, %v1806, %v1808
    %v1811 = vmul.f32 %v1794, %v1809
    %v1812 = vadd.f32 %v1790, %v1811
    %v1813 = vld [vmem:[#allocation2 + $0x2] sm:$0xf]
    %1814 = vset.pattern.permute.xlu0 27
    %1815 = vperm.xlu0 %1814, %v1218
    %v1816 = vpop.permute.xlu0 %1815
    %v1820 = vunpack.c.l.s4 1983009808
    %v1821 = vunpack.c.0.s8 %v1820
    %v1822 = vlaneseq
    %v1823 = vshrl.u32 %v1822, 7
    %v1824 = vsub.s32 %v1821, %v1823
    %v1825 = vrot.slane %v1813, %v1824
    %v1826 = vcombine.high %v1825, %v1825
    %1827 = vrot.lane.b32.xlu0 %v1825, 116
    %v1828 = vpop.permute.xlu0 %1827
    %1829 = vrot.lane.b32.xlu0 %v1826, 116
    %v1830 = vpop.permute.xlu0 %1829
    %v1831 = vsel %vm305, %v1828, %v1830
    %v1833 = vmul.f32 %v1816, %v1831
    %v1834 = vadd.f32 %v1812, %v1833
    %v1835 = vld [vmem:[#allocation2 + $0x2] sm:$0xf]
    %1836 = vset.pattern.permute.xlu0 28
    %1837 = vperm.xlu0 %1836, %v1218
    %v1838 = vpop.permute.xlu0 %1837
    %v1842 = vunpack.c.l.s4 1983009808
    %v1843 = vunpack.c.0.s8 %v1842
    %v1844 = vlaneseq
    %v1845 = vshrl.u32 %v1844, 7
    %v1846 = vsub.s32 %v1843, %v1845
    %v1847 = vrot.slane %v1835, %v1846
    %v1848 = vcombine.high %v1847, %v1847
    %1849 = vrot.lane.b32.xlu0 %v1847, 115
    %v1850 = vpop.permute.xlu0 %1849
    %1851 = vrot.lane.b32.xlu0 %v1848, 115
    %v1852 = vpop.permute.xlu0 %1851
    %v1853 = vsel %vm323, %v1850, %v1852
    %v1855 = vmul.f32 %v1838, %v1853
    %v1856 = vadd.f32 %v1834, %v1855
    %v1857 = vld [vmem:[#allocation2 + $0x2] sm:$0xf]
    %1858 = vset.pattern.permute.xlu0 29
    %1859 = vperm.xlu0 %1858, %v1218
    %v1860 = vpop.permute.xlu0 %1859
    %v1864 = vunpack.c.l.s4 1983009808
    %v1865 = vunpack.c.0.s8 %v1864
    %v1866 = vlaneseq
    %v1867 = vshrl.u32 %v1866, 7
    %v1868 = vsub.s32 %v1865, %v1867
    %v1869 = vrot.slane %v1857, %v1868
    %v1870 = vcombine.high %v1869, %v1869
    %1871 = vrot.lane.b32.xlu0 %v1869, 114
    %v1872 = vpop.permute.xlu0 %1871
    %1873 = vrot.lane.b32.xlu0 %v1870, 114
    %v1874 = vpop.permute.xlu0 %1873
    %v1875 = vsel %vm341, %v1872, %v1874
    %v1877 = vmul.f32 %v1860, %v1875
    %v1878 = vadd.f32 %v1856, %v1877
    %v1879 = vld [vmem:[#allocation2 + $0x2] sm:$0xf]
    %1880 = vset.pattern.permute.xlu0 30
    %1881 = vperm.xlu0 %1880, %v1218
    %v1882 = vpop.permute.xlu0 %1881
    %v1886 = vunpack.c.l.s4 1983009808
    %v1887 = vunpack.c.0.s8 %v1886
    %v1888 = vlaneseq
    %v1889 = vshrl.u32 %v1888, 7
    %v1890 = vsub.s32 %v1887, %v1889
    %v1891 = vrot.slane %v1879, %v1890
    %v1892 = vcombine.high %v1891, %v1891
    %1893 = vrot.lane.b32.xlu0 %v1891, 113
    %v1894 = vpop.permute.xlu0 %1893
    %1895 = vrot.lane.b32.xlu0 %v1892, 113
    %v1896 = vpop.permute.xlu0 %1895
    %vm1897 = vcmask 924672
    %v1898 = vsel %vm1897, %v1894, %v1896
    %v1900 = vmul.f32 %v1882, %v1898
    %v1901 = vadd.f32 %v1878, %v1900
    %1903 = vset.pattern.permute.xlu0 1
    %1904 = vperm.xlu0 %1903, %v862
    %v1905 = vpop.permute.xlu0 %1904
    %v1907 = vmul.f32 %v1905, %v41
    %1908 = vset.pattern.permute.xlu0 2
    %1909 = vperm.xlu0 %1908, %v862
    %v1910 = vpop.permute.xlu0 %1909
    %v1912 = vmul.f32 %v1910, %v1901
    %v1913 = vadd.f32 %v1907, %v1912
    %v1914 = vsub.f32 1.0, %v1141
    %v1915 = vmul.f32 %v41, %v1914
    %1916 = vset.pattern.permute.xlu0 3
    %1917 = vperm.xlu0 %1916, %v862
    %v1918 = vpop.permute.xlu0 %1917
    %v1920 = vmul.f32 %v1918, %v1915
    %v1921 = vadd.f32 %v1913, %v1920
    %1922 = vst [vmem:[#allocation8] sm:$0x3] %v1921
    %1923 = vst [vmem:[#allocation8 + $0x2] sm:$0x3] %v1141
    // Predicated region
    $region18: #{tpu_custom_call.1} parent=1 // pred_check
      _
    $region19: #{tpu_custom_call.1} parent=1 // pred_check_branch
      %1925 = sbr.rel (0) target = $region21
    $region20: #{tpu_custom_call.1} parent=1 // pred_region
      %s1927 = ssub.s32 64, 64
      %1928 = vsyncadd [#allocation5], %s1927
      %s1930 = sshll.u32 [#allocation8], 4
      %s1931 = int_to_ptr.vmem [resolvable:$true] %s1930
      %1933 = dma.vmem_to_hbm [thread:$0]  %s1931, 64, %s2, [#allocation5]
    $region21: #{tpu_custom_call.1} parent=1 // pred_fallthru
      _
    // Predicated region
    $region22: #{tpu_custom_call.1} parent=1 // pred_check
      _
    $region23: #{tpu_custom_call.1} parent=1 // pred_check_branch
      %1935 = sbr.rel (0) target = $region25
    $region24: #{tpu_custom_call.1} parent=1 // pred_region
      %s1937 = ssub.s32 32, 32
      %1938 = vsyncadd [#allocation10], %s1937
      %s1940 = sshll.u32 [#allocation9], 4
      %s1941 = int_to_ptr.vmem [resolvable:$true] %s1940
      %1943 = dma.vmem_to_hbm [thread:$0]  %s1941, 32, %s3, [#allocation10]
    $region25: #{tpu_custom_call.1} parent=1 // pred_fallthru
      _
    // Predicated region
    $region26: #{tpu_custom_call.1} parent=1 // pred_check
      _
    $region27: #{tpu_custom_call.1} parent=1 // pred_check_branch
      %1945 = sbr.rel (0) target = $region29
    $region28: #{tpu_custom_call.1} parent=1 // pred_region
      %1946 = dma.done [#allocation5], 64
    $region29: #{tpu_custom_call.1} parent=1 // pred_fallthru
      _
    // Predicated region
    $region30: #{tpu_custom_call.1} parent=1 // pred_check
      _
    $region31: #{tpu_custom_call.1} parent=1 // pred_check_branch
      %1948 = sbr.rel (0) target = $region33
    $region32: #{tpu_custom_call.1} parent=1 // pred_region
      %1949 = dma.done [#allocation10], 32
    $region33: #{tpu_custom_call.1} parent=1 // pred_fallthru
      _
    %1950 = vsyncpa [#allocation4], 1
    %1951 = vsyncpa [#allocation7], 1
    %1952 = vsyncpa [#allocation5], 1
    %1953 = vsyncpa [#allocation10], 1

</llo_original>
